<compile_context>
chip_gen: v5e
topology: v5e:2x2
jax: 0.10.0
libtpu: 0.0.40
codegen_flags: <defaults>
</compile_context>

<pallas_src>
import math
import numpy as np
import jax
import jax.numpy as jnp
from jax.experimental import pallas as pl
from jax.experimental.pallas import tpu as pltpu


def _svls_effective_weights(kernel_size=3, sigma=1.0):
    """27-tap effective conv weights (pure-JAX reference only).

    Reproduces get_svls_filter_3d + the /svls_kernel.sum() in forward:
    effective weights = modified_gaussian / modified_gaussian.sum().
    """
    ks = kernel_size
    coords = np.arange(ks, dtype=np.float64)
    mean = (ks - 1) / 2.0
    var = float(sigma) ** 2
    ii, jj, kk = np.meshgrid(coords, coords, coords, indexing="ij")
    d2 = (ii - mean) ** 2 + (jj - mean) ** 2 + (kk - mean) ** 2
    g = (1.0 / (2.0 * math.pi * var + 1e-16)) * np.exp(-d2 / (2.0 * var + 1e-16))
    g = g / g.sum()
    c = ks // 2
    center = g[c, c, c]
    g[c, c, c] = 1.0 - center
    return (g / g.sum()).astype(np.float32)


def _svls_separable_weights(sigma=1.0):
    """1-D normalized Gaussian taps (gc, gs): normalized 3-D Gaussian == g1 (x) g1 (x) g1."""
    coords = np.arange(3, dtype=np.float64)
    var = float(sigma) ** 2
    e = np.exp(-((coords - 1.0) ** 2) / (2.0 * var + 1e-16))
    g1 = e / e.sum()
    return float(g1[1]), float(g1[0])  # (center tap, side tap)


def _make_svls_ce_kernel(C, D, H, W, TD, sigma):
    HW = H * W
    gc_, gs_ = _svls_separable_weights(sigma)  # 1-D taps [gs, gc, gs]
    center3 = gc_ ** 3                          # center of the separable 3-D Gaussian
    delta_w = 1.0 - 2.0 * center3               # SVLS center correction
    inv_denom = 1.0 / (2.0 * (1.0 - center3))

    def kernel(lab_ref, logits_ref, out_ref):
        t = pl.program_id(1)
        d0 = pl.multiple_of(t * TD, TD)

        # ---- labels: current D-tile + +/-1 depth halo from the resident full-D block ----
        lab_tile = lab_ref[0, pl.ds(d0, TD), :]                 # (TD, HW) int32
        up = jnp.maximum(d0 - 1, 0)                             # replicate at global d = -1
        dn = jnp.minimum(d0 + TD, D - 1)                        # replicate at global d = D
        lab_up = lab_ref[0, pl.ds(up, 1), :]                    # (1, HW)
        lab_dn = lab_ref[0, pl.ds(dn, 1), :]                    # (1, HW)

        # ---- hoisted boundary masks (emulate replicate padding; computed once/step) ----
        def lane_masks(shape):
            lane = jax.lax.broadcasted_iota(jnp.int32, shape, 1)
            w_idx = lane % W
            return (w_idx == 0, w_idx == W - 1, lane < W, lane >= HW - W)

        masks_tile = lane_masks((TD, HW))
        masks_row = lane_masks((1, HW))
        row = jax.lax.broadcasted_iota(jnp.int32, (TD, HW), 0)
        row0 = row == 0
        rowN = row == TD - 1

        def wh_smooth(x, masks):
            fw, lw, fh, lh = masks
            # W pass: lane shift +/-1 via pltpu.roll (XLU); boundary = replicate.
            wm = jnp.where(fw, x, pltpu.roll(x, shift=1, axis=1))
            wp = jnp.where(lw, x, pltpu.roll(x, shift=HW - 1, axis=1))
            y = gc_ * x + gs_ * (wm + wp)
            # H pass: lane shift +/-W inside the flattened (H, W) lane axis.
            hm = jnp.where(fh, y, pltpu.roll(y, shift=W, axis=1))
            hp = jnp.where(lh, y, pltpu.roll(y, shift=HW - W, axis=1))
            return gc_ * y + gs_ * (hm + hp)

        ones = jnp.ones((HW, 1), jnp.float32)

        # ---- pass 1: class max (kept separate; streaming minimum is 2 reads/channel) ----
        m = logits_ref[0, 0].astype(jnp.float32)
        for c in range(1, C):
            m = jnp.maximum(m, logits_ref[0, c].astype(jnp.float32))

        # ---- pass 2 (merged): sumexp + SVLS inner product, reduced on the MXU per class ----
        # TODO(synk): for large C convert this static unroll to lax.fori_loop; for C=4 it is fine.
        sumexp = jnp.zeros((TD, HW), jnp.float32)
        dot_col = jnp.zeros((TD, 1), jnp.float32)
        for c in range(C):
            shifted = logits_ref[0, c].astype(jnp.float32) - m   # single load/cast/sub per class
            sumexp = sumexp + jnp.exp(shifted)

            # Smoothed one-hot (separable Gaussian + center correction == 27-tap SVLS).
            # Smoothing kept in f32 for exact parity with the reference (bf16 smoothing is a
            # possible v6e/v7x VPU win at ~1e-3 relative drift).
            oh = (lab_tile == c).astype(jnp.float32)
            z = wh_smooth(oh, masks_tile)                        # W,H passes on the tile
            zu = wh_smooth((lab_up == c).astype(jnp.float32), masks_row)  # halo row above
            zd = wh_smooth((lab_dn == c).astype(jnp.float32), masks_row)  # halo row below
            # D pass: sublane rolls (XLU) + halo rows injected at the tile boundary rows.
            dm = jnp.where(row0, zu, pltpu.roll(z, shift=1, axis=0))
            dp = jnp.where(rowN, zd, pltpu.roll(z, shift=TD - 1, axis=0))
            w_eff = (gc_ * z + gs_ * (dm + dp) + delta_w * oh) * inv_denom

            dot_col = dot_col + jnp.dot(w_eff * shifted, ones,
                                        preferred_element_type=jnp.float32)  # (TD, 1)

        lse = jnp.log(sumexp)                                    # (TD, HW)
        lse_col = jnp.dot(lse, ones, preferred_element_type=jnp.float32)     # (TD, 1)

        # Per-D-row partial sum of the per-voxel loss for this tile.
        out_ref[...] = (lse_col - dot_col).reshape(1, TD, 1)

    return kernel


def _choose_d_tile(C, D, HW, logits_itemsize):
    """Largest multiple-of-8 divisor of D whose logits tile (double-buffered) stays well
    inside the smallest-generation (v7x, 64 MiB) VMEM budget."""
    budget = 12 * 1024 * 1024
    best = None
    for td in range(8, D + 1, 8):
        if D % td == 0 and C * td * HW * logits_itemsize <= budget:
            best = td
    if best is None:
        best = D if D % 8 != 0 else 8
    return best


def ce_loss_with_svls(logits, labels, *, num_classes, sigma=1.0, d_tile=None):
    """JAX/Pallas equivalent of CELossWithSVLS(classes, sigma).forward(inputs, labels)."""
    b, C, D, H, W = logits.shape
    assert C == num_classes
    HW = H * W
    # Lane-dense layout requirement: (H, W) flattened onto the 128-lane axis.
    assert HW % 128 == 0, "H*W must be a multiple of 128 for the lane-dense layout"

    if d_tile is None:
        d_tile = _choose_d_tile(C, D, HW, jnp.dtype(logits.dtype).itemsize)
    assert d_tile == D or (D % d_tile == 0 and d_tile % 8 == 0), \
        "d_tile must divide D and be a multiple of 8 (or equal D)"
    n_t = D // d_tile

    logits_r = logits.reshape(b, C, D, HW)                # native dtype; upcast in-kernel
    # TODO(synk): on v7x keep the resident label volume as int8 (classes <= 127) to cut
    # resident VMEM and the label DMA 4x; int32 kept here for layout simplicity.
    labels_r = labels.astype(jnp.int32).reshape(b, D, HW)

    kernel = _make_svls_ce_kernel(C, D, H, W, d_tile, sigma)

    # vmem limit derived from the actual per-step footprint (double-buffered blocks +
    # headroom for f32 temporaries), capped to stay safe on v7x (64 MiB physical).
    itemsize = jnp.dtype(logits.dtype).itemsize
    logits_blk = C * d_tile * HW * itemsize
    labels_blk = D * HW * labels_r.dtype.itemsize
    out_blk = d_tile * 4
    per_step = 2 * (logits_blk + labels_blk + out_blk) + 24 * d_tile * HW * 4
    vmem_limit = int(min(48 * 1024 * 1024, max(16 * 1024 * 1024, 2 * per_step)))

    partials = pl.pallas_call(
        kernel,
        out_shape=jax.ShapeDtypeStruct((b, D, 1), jnp.float32),
        grid_spec=pltpu.PrefetchScalarGridSpec(
            num_scalar_prefetch=0,
            grid=(b, n_t),
            in_specs=[
                # Labels: full per-batch volume resident across the D-tile axis
                # (index_map ignores t), so the depth halo reads come from VMEM.
                pl.BlockSpec((1, D, HW), lambda i, t: (i, 0, 0)),
                # Logits: streamed one (C, TD, HW) depth tile per grid step.
                pl.BlockSpec((1, C, d_tile, HW), lambda i, t: (i, 0, t, 0)),
            ],
            out_specs=pl.BlockSpec((1, d_tile, 1), lambda i, t: (i, t, 0)),
        ),
        compiler_params=pltpu.CompilerParams(
            dimension_semantics=("parallel", "parallel"),   # independent (b, d-tile) partials
            vmem_limit_bytes=vmem_limit,
        ),
    )(labels_r, logits_r)

    # (-svls * log_softmax).sum(dim=1).mean()  over (b, d, h, w)
    return jnp.sum(partials) / (b * D * H * W)


def _reference(logits, labels, num_classes, sigma=1.0):
    """Pure-JAX reference mirroring the PyTorch forward (27-tap conv on padded one-hot)."""
    w_eff = jnp.asarray(_svls_effective_weights(3, sigma))
    b, C, D, H, W = logits.shape
    oh = (labels[:, None, :, :, :] == jnp.arange(num_classes)[None, :, None, None, None])
    oh = oh.astype(jnp.float32)
    ohp = jnp.pad(oh, ((0, 0), (0, 0), (1, 1), (1, 1), (1, 1)), mode="edge")
    svls = jnp.zeros_like(oh)
    for kd in range(3):
        for kh in range(3):
            for kw in range(3):
                svls = svls + w_eff[kd, kh, kw] * ohp[:, :, kd:kd + D, kh:kh + H, kw:kw + W]
    log_sm = jax.nn.log_softmax(logits.astype(jnp.float32), axis=1)
    return (-svls * log_sm).sum(axis=1).mean()


if __name__ == "__main__":
    key = jax.random.PRNGKey(0)
    k1, k2 = jax.random.split(key)

    B, C, D, H, W = 2, 4, 16, 16, 16      # H*W = 256 -> lane-dense blocks
    logits = jax.random.normal(k1, (B, C, D, H, W), dtype=jnp.float32)
    labels = jax.random.randint(k2, (B, D, H, W), 0, C, dtype=jnp.int32)

    # d_tile=8 -> 2 depth tiles per batch: exercises the resident-label halo path on both
    # global boundaries and one interior tile boundary.
    loss = ce_loss_with_svls(logits, labels, num_classes=C, sigma=1.0, d_tile=8)
    loss = jax.block_until_ready(loss)

    ref = jax.block_until_ready(_reference(logits, labels, C, 1.0))
    np.testing.assert_allclose(np.asarray(loss), np.asarray(ref), rtol=1e-4, atol=1e-5)

    print("KERNEL_OK")
</pallas_src>

<mosaic_0001>
module attributes {stable_mosaic.version = 11 : i64} {
  func.func @kernel(%arg0: i32, %arg1: i32, %arg2: memref<1x16x256xi32, #tpu.memory_space<vmem>>, %arg3: memref<1x4x8x256xf32, #tpu.memory_space<vmem>>, %arg4: memref<1x8x1xf32, #tpu.memory_space<vmem>>) attributes {dimension_semantics = [#tpu.dimension_semantics<parallel>, #tpu.dimension_semantics<parallel>], iteration_bounds = array<i64: 2, 2>, scalar_prefetch = 0 : i64, scratch_operands = 0 : i64, tpu.core_type = #tpu.core_type<tc>, window_params = [{transform_indices = @transform_0, window_bounds = array<i64: 1, 16, 256>}, {transform_indices = @transform_1, window_bounds = array<i64: 1, 4, 8, 256>}, {transform_indices = @transform_2, window_bounds = array<i64: 1, 8, 1>}]} {
    %c8_i32 = arith.constant 8 : i32
    %0 = arith.muli %arg1, %c8_i32 : i32
    %1 = tpu.assume_multiple %0, 8 : i32
    %c0 = arith.constant 0 : index
    %2 = arith.index_cast %1 : i32 to index
    %c0_0 = arith.constant 0 : index
    %3 = vector.load %arg2[%c0, %2, %c0_0] : memref<1x16x256xi32, #tpu.memory_space<vmem>>, vector<1x8x256xi32>
    %4 = vector.shape_cast %3 : vector<1x8x256xi32> to vector<8x256xi32>
    %c1_i32 = arith.constant 1 : i32
    %5 = arith.subi %1, %c1_i32 : i32
    %c0_i32 = arith.constant 0 : i32
    %6 = arith.maxsi %5, %c0_i32 : i32
    %c8_i32_1 = arith.constant 8 : i32
    %7 = arith.addi %1, %c8_i32_1 : i32
    %c15_i32 = arith.constant 15 : i32
    %8 = arith.minsi %7, %c15_i32 : i32
    %c0_2 = arith.constant 0 : index
    %9 = arith.index_cast %6 : i32 to index
    %c0_3 = arith.constant 0 : index
    %10 = vector.load %arg2[%c0_2, %9, %c0_3] : memref<1x16x256xi32, #tpu.memory_space<vmem>>, vector<1x1x256xi32>
    %11 = vector.shape_cast %10 : vector<1x1x256xi32> to vector<1x256xi32>
    %c0_4 = arith.constant 0 : index
    %12 = arith.index_cast %8 : i32 to index
    %c0_5 = arith.constant 0 : index
    %13 = vector.load %arg2[%c0_4, %12, %c0_5] : memref<1x16x256xi32, #tpu.memory_space<vmem>>, vector<1x1x256xi32>
    %14 = vector.shape_cast %13 : vector<1x1x256xi32> to vector<1x256xi32>
    %15 = tpu.iota {dimensions = array<i32: 1>} : vector<8x256xi32>
    %c16_i32 = arith.constant 16 : i32
    %c0_i32_6 = arith.constant 0 : i32
    %16 = arith.cmpi eq, %c16_i32, %c0_i32_6 : i32
    %c1_i32_7 = arith.constant 1 : i32
    %17 = arith.select %16, %c1_i32_7, %c16_i32 : i32
    %18 = vector.broadcast %17 : i32 to vector<8x256xi32>
    %19 = arith.remsi %15, %18 : vector<8x256xi32>
    %c0_i32_8 = arith.constant 0 : i32
    %20 = vector.broadcast %c0_i32_8 : i32 to vector<8x256xi32>
    %21 = arith.cmpi ne, %19, %20 : vector<8x256xi32>
    %c0_i32_9 = arith.constant 0 : i32
    %22 = vector.broadcast %c0_i32_9 : i32 to vector<8x256xi32>
    %23 = arith.cmpi slt, %19, %22 : vector<8x256xi32>
    %c0_i32_10 = arith.constant 0 : i32
    %24 = arith.cmpi slt, %17, %c0_i32_10 : i32
    %25 = vector.broadcast %24 : i1 to vector<8x256xi1>
    %26 = vector.broadcast %25 : vector<8x256xi1> to vector<8x256xi1>
    %27 = arith.xori %23, %26 : vector<8x256xi1>
    %28 = arith.andi %27, %21 : vector<8x256xi1>
    %29 = vector.broadcast %17 : i32 to vector<8x256xi32>
    %30 = arith.addi %19, %29 : vector<8x256xi32>
    %31 = arith.select %28, %30, %19 : vector<8x256xi1>, vector<8x256xi32>
    %c0_i32_11 = arith.constant 0 : i32
    %32 = vector.broadcast %c0_i32_11 : i32 to vector<8x256xi32>
    %33 = arith.cmpi eq, %31, %32 : vector<8x256xi32>
    %c15_i32_12 = arith.constant 15 : i32
    %34 = vector.broadcast %c15_i32_12 : i32 to vector<8x256xi32>
    %35 = arith.cmpi eq, %31, %34 : vector<8x256xi32>
    %c16_i32_13 = arith.constant 16 : i32
    %36 = vector.broadcast %c16_i32_13 : i32 to vector<8x256xi32>
    %37 = arith.cmpi slt, %15, %36 : vector<8x256xi32>
    %c240_i32 = arith.constant 240 : i32
    %38 = vector.broadcast %c240_i32 : i32 to vector<8x256xi32>
    %39 = arith.cmpi sge, %15, %38 : vector<8x256xi32>
    %40 = tpu.iota {dimensions = array<i32: 1>} : vector<1x256xi32>
    %c16_i32_14 = arith.constant 16 : i32
    %c0_i32_15 = arith.constant 0 : i32
    %41 = arith.cmpi eq, %c16_i32_14, %c0_i32_15 : i32
    %c1_i32_16 = arith.constant 1 : i32
    %42 = arith.select %41, %c1_i32_16, %c16_i32_14 : i32
    %43 = vector.broadcast %42 : i32 to vector<1x256xi32>
    %44 = arith.remsi %40, %43 : vector<1x256xi32>
    %c0_i32_17 = arith.constant 0 : i32
    %45 = vector.broadcast %c0_i32_17 : i32 to vector<1x256xi32>
    %46 = arith.cmpi ne, %44, %45 : vector<1x256xi32>
    %c0_i32_18 = arith.constant 0 : i32
    %47 = vector.broadcast %c0_i32_18 : i32 to vector<1x256xi32>
    %48 = arith.cmpi slt, %44, %47 : vector<1x256xi32>
    %c0_i32_19 = arith.constant 0 : i32
    %49 = arith.cmpi slt, %42, %c0_i32_19 : i32
    %50 = vector.broadcast %49 : i1 to vector<1x256xi1>
    %51 = vector.broadcast %50 : vector<1x256xi1> to vector<1x256xi1>
    %52 = arith.xori %48, %51 : vector<1x256xi1>
    %53 = arith.andi %52, %46 : vector<1x256xi1>
    %54 = vector.broadcast %42 : i32 to vector<1x256xi32>
    %55 = arith.addi %44, %54 : vector<1x256xi32>
    %56 = arith.select %53, %55, %44 : vector<1x256xi1>, vector<1x256xi32>
    %c0_i32_20 = arith.constant 0 : i32
    %57 = vector.broadcast %c0_i32_20 : i32 to vector<1x256xi32>
    %58 = arith.cmpi eq, %56, %57 : vector<1x256xi32>
    %c15_i32_21 = arith.constant 15 : i32
    %59 = vector.broadcast %c15_i32_21 : i32 to vector<1x256xi32>
    %60 = arith.cmpi eq, %56, %59 : vector<1x256xi32>
    %c16_i32_22 = arith.constant 16 : i32
    %61 = vector.broadcast %c16_i32_22 : i32 to vector<1x256xi32>
    %62 = arith.cmpi slt, %40, %61 : vector<1x256xi32>
    %c240_i32_23 = arith.constant 240 : i32
    %63 = vector.broadcast %c240_i32_23 : i32 to vector<1x256xi32>
    %64 = arith.cmpi sge, %40, %63 : vector<1x256xi32>
    %65 = tpu.iota {dimensions = array<i32: 0>} : vector<8x256xi32>
    %c0_i32_24 = arith.constant 0 : i32
    %66 = vector.broadcast %c0_i32_24 : i32 to vector<8x256xi32>
    %67 = arith.cmpi eq, %65, %66 : vector<8x256xi32>
    %c7_i32 = arith.constant 7 : i32
    %68 = vector.broadcast %c7_i32 : i32 to vector<8x256xi32>
    %69 = arith.cmpi eq, %65, %68 : vector<8x256xi32>
    %cst = arith.constant 1.000000e+00 : f32
    %70 = vector.broadcast %cst : f32 to vector<256x1xf32>
    %c0_25 = arith.constant 0 : index
    %c0_26 = arith.constant 0 : index
    %c0_27 = arith.constant 0 : index
    %c0_28 = arith.constant 0 : index
    %71 = vector.load %arg3[%c0_25, %c0_26, %c0_27, %c0_28] : memref<1x4x8x256xf32, #tpu.memory_space<vmem>>, vector<1x1x8x256xf32>
    %72 = vector.shape_cast %71 : vector<1x1x8x256xf32> to vector<8x256xf32>
    %c0_29 = arith.constant 0 : index
    %c1 = arith.constant 1 : index
    %c0_30 = arith.constant 0 : index
    %c0_31 = arith.constant 0 : index
    %73 = vector.load %arg3[%c0_29, %c1, %c0_30, %c0_31] : memref<1x4x8x256xf32, #tpu.memory_space<vmem>>, vector<1x1x8x256xf32>
    %74 = vector.shape_cast %73 : vector<1x1x8x256xf32> to vector<8x256xf32>
    %75 = arith.maximumf %72, %74 : vector<8x256xf32>
    %c0_32 = arith.constant 0 : index
    %c2 = arith.constant 2 : index
    %c0_33 = arith.constant 0 : index
    %c0_34 = arith.constant 0 : index
    %76 = vector.load %arg3[%c0_32, %c2, %c0_33, %c0_34] : memref<1x4x8x256xf32, #tpu.memory_space<vmem>>, vector<1x1x8x256xf32>
    %77 = vector.shape_cast %76 : vector<1x1x8x256xf32> to vector<8x256xf32>
    %78 = arith.maximumf %75, %77 : vector<8x256xf32>
    %c0_35 = arith.constant 0 : index
    %c3 = arith.constant 3 : index
    %c0_36 = arith.constant 0 : index
    %c0_37 = arith.constant 0 : index
    %79 = vector.load %arg3[%c0_35, %c3, %c0_36, %c0_37] : memref<1x4x8x256xf32, #tpu.memory_space<vmem>>, vector<1x1x8x256xf32>
    %80 = vector.shape_cast %79 : vector<1x1x8x256xf32> to vector<8x256xf32>
    %81 = arith.maximumf %78, %80 : vector<8x256xf32>
    %cst_38 = arith.constant 0.000000e+00 : f32
    %82 = vector.broadcast %cst_38 : f32 to vector<8x256xf32>
    %cst_39 = arith.constant 0.000000e+00 : f32
    %83 = vector.broadcast %cst_39 : f32 to vector<8x1xf32>
    %c0_40 = arith.constant 0 : index
    %c0_41 = arith.constant 0 : index
    %c0_42 = arith.constant 0 : index
    %c0_43 = arith.constant 0 : index
    %84 = vector.load %arg3[%c0_40, %c0_41, %c0_42, %c0_43] : memref<1x4x8x256xf32, #tpu.memory_space<vmem>>, vector<1x1x8x256xf32>
    %85 = vector.shape_cast %84 : vector<1x1x8x256xf32> to vector<8x256xf32>
    %86 = arith.subf %85, %81 : vector<8x256xf32>
    %87 = math.exp %86 : vector<8x256xf32>
    %88 = arith.addf %82, %87 : vector<8x256xf32>
    %c0_i32_44 = arith.constant 0 : i32
    %89 = vector.broadcast %c0_i32_44 : i32 to vector<8x256xi32>
    %90 = arith.cmpi eq, %4, %89 : vector<8x256xi32>
    %91 = arith.extui %90 : vector<8x256xi1> to vector<8x256xi32>
    %92 = arith.sitofp %91 : vector<8x256xi32> to vector<8x256xf32>
    %c1_i32_45 = arith.constant 1 : i32
    %93 = tpu.dynamic_rotate %92 by %c1_i32_45 dim 1 : vector<8x256xf32>, i32 -> vector<8x256xf32>
    %94 = arith.select %33, %92, %93 : vector<8x256xi1>, vector<8x256xf32>
    %c255_i32 = arith.constant 255 : i32
    %95 = tpu.dynamic_rotate %92 by %c255_i32 dim 1 : vector<8x256xf32>, i32 -> vector<8x256xf32>
    %96 = arith.select %35, %92, %95 : vector<8x256xi1>, vector<8x256xf32>
    %cst_46 = arith.constant 0.451862752 : f32
    %97 = vector.broadcast %cst_46 : f32 to vector<8x256xf32>
    %98 = arith.mulf %97, %92 : vector<8x256xf32>
    %99 = arith.addf %94, %96 : vector<8x256xf32>
    %cst_47 = arith.constant 0.274068624 : f32
    %100 = vector.broadcast %cst_47 : f32 to vector<8x256xf32>
    %101 = arith.mulf %100, %99 : vector<8x256xf32>
    %102 = arith.addf %98, %101 : vector<8x256xf32>
    %c16_i32_48 = arith.constant 16 : i32
    %103 = tpu.dynamic_rotate %102 by %c16_i32_48 dim 1 : vector<8x256xf32>, i32 -> vector<8x256xf32>
    %104 = arith.select %37, %102, %103 : vector<8x256xi1>, vector<8x256xf32>
    %c240_i32_49 = arith.constant 240 : i32
    %105 = tpu.dynamic_rotate %102 by %c240_i32_49 dim 1 : vector<8x256xf32>, i32 -> vector<8x256xf32>
    %106 = arith.select %39, %102, %105 : vector<8x256xi1>, vector<8x256xf32>
    %cst_50 = arith.constant 0.451862752 : f32
    %107 = vector.broadcast %cst_50 : f32 to vector<8x256xf32>
    %108 = arith.mulf %107, %102 : vector<8x256xf32>
    %109 = arith.addf %104, %106 : vector<8x256xf32>
    %cst_51 = arith.constant 0.274068624 : f32
    %110 = vector.broadcast %cst_51 : f32 to vector<8x256xf32>
    %111 = arith.mulf %110, %109 : vector<8x256xf32>
    %112 = arith.addf %108, %111 : vector<8x256xf32>
    %c0_i32_52 = arith.constant 0 : i32
    %113 = vector.broadcast %c0_i32_52 : i32 to vector<1x256xi32>
    %114 = arith.cmpi eq, %11, %113 : vector<1x256xi32>
    %115 = arith.extui %114 : vector<1x256xi1> to vector<1x256xi32>
    %116 = arith.sitofp %115 : vector<1x256xi32> to vector<1x256xf32>
    %c1_i32_53 = arith.constant 1 : i32
    %117 = tpu.dynamic_rotate %116 by %c1_i32_53 dim 1 : vector<1x256xf32>, i32 -> vector<1x256xf32>
    %118 = arith.select %58, %116, %117 : vector<1x256xi1>, vector<1x256xf32>
    %c255_i32_54 = arith.constant 255 : i32
    %119 = tpu.dynamic_rotate %116 by %c255_i32_54 dim 1 : vector<1x256xf32>, i32 -> vector<1x256xf32>
    %120 = arith.select %60, %116, %119 : vector<1x256xi1>, vector<1x256xf32>
    %cst_55 = arith.constant 0.451862752 : f32
    %121 = vector.broadcast %cst_55 : f32 to vector<1x256xf32>
    %122 = arith.mulf %121, %116 : vector<1x256xf32>
    %123 = arith.addf %118, %120 : vector<1x256xf32>
    %cst_56 = arith.constant 0.274068624 : f32
    %124 = vector.broadcast %cst_56 : f32 to vector<1x256xf32>
    %125 = arith.mulf %124, %123 : vector<1x256xf32>
    %126 = arith.addf %122, %125 : vector<1x256xf32>
    %c16_i32_57 = arith.constant 16 : i32
    %127 = tpu.dynamic_rotate %126 by %c16_i32_57 dim 1 : vector<1x256xf32>, i32 -> vector<1x256xf32>
    %128 = arith.select %62, %126, %127 : vector<1x256xi1>, vector<1x256xf32>
    %c240_i32_58 = arith.constant 240 : i32
    %129 = tpu.dynamic_rotate %126 by %c240_i32_58 dim 1 : vector<1x256xf32>, i32 -> vector<1x256xf32>
    %130 = arith.select %64, %126, %129 : vector<1x256xi1>, vector<1x256xf32>
    %cst_59 = arith.constant 0.451862752 : f32
    %131 = vector.broadcast %cst_59 : f32 to vector<1x256xf32>
    %132 = arith.mulf %131, %126 : vector<1x256xf32>
    %133 = arith.addf %128, %130 : vector<1x256xf32>
    %cst_60 = arith.constant 0.274068624 : f32
    %134 = vector.broadcast %cst_60 : f32 to vector<1x256xf32>
    %135 = arith.mulf %134, %133 : vector<1x256xf32>
    %136 = arith.addf %132, %135 : vector<1x256xf32>
    %c0_i32_61 = arith.constant 0 : i32
    %137 = vector.broadcast %c0_i32_61 : i32 to vector<1x256xi32>
    %138 = arith.cmpi eq, %14, %137 : vector<1x256xi32>
    %139 = arith.extui %138 : vector<1x256xi1> to vector<1x256xi32>
    %140 = arith.sitofp %139 : vector<1x256xi32> to vector<1x256xf32>
    %c1_i32_62 = arith.constant 1 : i32
    %141 = tpu.dynamic_rotate %140 by %c1_i32_62 dim 1 : vector<1x256xf32>, i32 -> vector<1x256xf32>
    %142 = arith.select %58, %140, %141 : vector<1x256xi1>, vector<1x256xf32>
    %c255_i32_63 = arith.constant 255 : i32
    %143 = tpu.dynamic_rotate %140 by %c255_i32_63 dim 1 : vector<1x256xf32>, i32 -> vector<1x256xf32>
    %144 = arith.select %60, %140, %143 : vector<1x256xi1>, vector<1x256xf32>
    %cst_64 = arith.constant 0.451862752 : f32
    %145 = vector.broadcast %cst_64 : f32 to vector<1x256xf32>
    %146 = arith.mulf %145, %140 : vector<1x256xf32>
    %147 = arith.addf %142, %144 : vector<1x256xf32>
    %cst_65 = arith.constant 0.274068624 : f32
    %148 = vector.broadcast %cst_65 : f32 to vector<1x256xf32>
    %149 = arith.mulf %148, %147 : vector<1x256xf32>
    %150 = arith.addf %146, %149 : vector<1x256xf32>
    %c16_i32_66 = arith.constant 16 : i32
    %151 = tpu.dynamic_rotate %150 by %c16_i32_66 dim 1 : vector<1x256xf32>, i32 -> vector<1x256xf32>
    %152 = arith.select %62, %150, %151 : vector<1x256xi1>, vector<1x256xf32>
    %c240_i32_67 = arith.constant 240 : i32
    %153 = tpu.dynamic_rotate %150 by %c240_i32_67 dim 1 : vector<1x256xf32>, i32 -> vector<1x256xf32>
    %154 = arith.select %64, %150, %153 : vector<1x256xi1>, vector<1x256xf32>
    %cst_68 = arith.constant 0.451862752 : f32
    %155 = vector.broadcast %cst_68 : f32 to vector<1x256xf32>
    %156 = arith.mulf %155, %150 : vector<1x256xf32>
    %157 = arith.addf %152, %154 : vector<1x256xf32>
    %cst_69 = arith.constant 0.274068624 : f32
    %158 = vector.broadcast %cst_69 : f32 to vector<1x256xf32>
    %159 = arith.mulf %158, %157 : vector<1x256xf32>
    %160 = arith.addf %156, %159 : vector<1x256xf32>
    %c1_i32_70 = arith.constant 1 : i32
    %161 = tpu.dynamic_rotate %112 by %c1_i32_70 dim 0 : vector<8x256xf32>, i32 -> vector<8x256xf32>
    %162 = vector.shape_cast %136 : vector<1x256xf32> to vector<1x256xf32>
    %163 = vector.broadcast %162 : vector<1x256xf32> to vector<8x256xf32>
    %164 = arith.select %67, %163, %161 : vector<8x256xi1>, vector<8x256xf32>
    %c7_i32_71 = arith.constant 7 : i32
    %165 = tpu.dynamic_rotate %112 by %c7_i32_71 dim 0 : vector<8x256xf32>, i32 -> vector<8x256xf32>
    %166 = vector.shape_cast %160 : vector<1x256xf32> to vector<1x256xf32>
    %167 = vector.broadcast %166 : vector<1x256xf32> to vector<8x256xf32>
    %168 = arith.select %69, %167, %165 : vector<8x256xi1>, vector<8x256xf32>
    %cst_72 = arith.constant 0.451862752 : f32
    %169 = vector.broadcast %cst_72 : f32 to vector<8x256xf32>
    %170 = arith.mulf %169, %112 : vector<8x256xf32>
    %171 = arith.addf %164, %168 : vector<8x256xf32>
    %cst_73 = arith.constant 0.274068624 : f32
    %172 = vector.broadcast %cst_73 : f32 to vector<8x256xf32>
    %173 = arith.mulf %172, %171 : vector<8x256xf32>
    %174 = arith.addf %170, %173 : vector<8x256xf32>
    %cst_74 = arith.constant 0.815477371 : f32
    %175 = vector.broadcast %cst_74 : f32 to vector<8x256xf32>
    %176 = arith.mulf %175, %92 : vector<8x256xf32>
    %177 = arith.addf %174, %176 : vector<8x256xf32>
    %cst_75 = arith.constant 0.550819337 : f32
    %178 = vector.broadcast %cst_75 : f32 to vector<8x256xf32>
    %179 = arith.mulf %177, %178 : vector<8x256xf32>
    %180 = arith.mulf %179, %86 : vector<8x256xf32>
    %cst_76 = arith.constant dense<0.000000e+00> : vector<8x1xf32>
    %181 = tpu.matmul %180, %70, %cst_76 {dimension_numbers = #tpu.dot_dimension_numbers<[1], [0], [0], [1], [0, 0, 1, 1], [], []>} : vector<8x256xf32>, vector<256x1xf32>, vector<8x1xf32> -> vector<8x1xf32>
    %182 = arith.addf %83, %181 : vector<8x1xf32>
    %c0_77 = arith.constant 0 : index
    %c1_78 = arith.constant 1 : index
    %c0_79 = arith.constant 0 : index
    %c0_80 = arith.constant 0 : index
    %183 = vector.load %arg3[%c0_77, %c1_78, %c0_79, %c0_80] : memref<1x4x8x256xf32, #tpu.memory_space<vmem>>, vector<1x1x8x256xf32>
    %184 = vector.shape_cast %183 : vector<1x1x8x256xf32> to vector<8x256xf32>
    %185 = arith.subf %184, %81 : vector<8x256xf32>
    %186 = math.exp %185 : vector<8x256xf32>
    %187 = arith.addf %88, %186 : vector<8x256xf32>
    %c1_i32_81 = arith.constant 1 : i32
    %188 = vector.broadcast %c1_i32_81 : i32 to vector<8x256xi32>
    %189 = arith.cmpi eq, %4, %188 : vector<8x256xi32>
    %190 = arith.extui %189 : vector<8x256xi1> to vector<8x256xi32>
    %191 = arith.sitofp %190 : vector<8x256xi32> to vector<8x256xf32>
    %c1_i32_82 = arith.constant 1 : i32
    %192 = tpu.dynamic_rotate %191 by %c1_i32_82 dim 1 : vector<8x256xf32>, i32 -> vector<8x256xf32>
    %193 = arith.select %33, %191, %192 : vector<8x256xi1>, vector<8x256xf32>
    %c255_i32_83 = arith.constant 255 : i32
    %194 = tpu.dynamic_rotate %191 by %c255_i32_83 dim 1 : vector<8x256xf32>, i32 -> vector<8x256xf32>
    %195 = arith.select %35, %191, %194 : vector<8x256xi1>, vector<8x256xf32>
    %cst_84 = arith.constant 0.451862752 : f32
    %196 = vector.broadcast %cst_84 : f32 to vector<8x256xf32>
    %197 = arith.mulf %196, %191 : vector<8x256xf32>
    %198 = arith.addf %193, %195 : vector<8x256xf32>
    %cst_85 = arith.constant 0.274068624 : f32
    %199 = vector.broadcast %cst_85 : f32 to vector<8x256xf32>
    %200 = arith.mulf %199, %198 : vector<8x256xf32>
    %201 = arith.addf %197, %200 : vector<8x256xf32>
    %c16_i32_86 = arith.constant 16 : i32
    %202 = tpu.dynamic_rotate %201 by %c16_i32_86 dim 1 : vector<8x256xf32>, i32 -> vector<8x256xf32>
    %203 = arith.select %37, %201, %202 : vector<8x256xi1>, vector<8x256xf32>
    %c240_i32_87 = arith.constant 240 : i32
    %204 = tpu.dynamic_rotate %201 by %c240_i32_87 dim 1 : vector<8x256xf32>, i32 -> vector<8x256xf32>
    %205 = arith.select %39, %201, %204 : vector<8x256xi1>, vector<8x256xf32>
    %cst_88 = arith.constant 0.451862752 : f32
    %206 = vector.broadcast %cst_88 : f32 to vector<8x256xf32>
    %207 = arith.mulf %206, %201 : vector<8x256xf32>
    %208 = arith.addf %203, %205 : vector<8x256xf32>
    %cst_89 = arith.constant 0.274068624 : f32
    %209 = vector.broadcast %cst_89 : f32 to vector<8x256xf32>
    %210 = arith.mulf %209, %208 : vector<8x256xf32>
    %211 = arith.addf %207, %210 : vector<8x256xf32>
    %c1_i32_90 = arith.constant 1 : i32
    %212 = vector.broadcast %c1_i32_90 : i32 to vector<1x256xi32>
    %213 = arith.cmpi eq, %11, %212 : vector<1x256xi32>
    %214 = arith.extui %213 : vector<1x256xi1> to vector<1x256xi32>
    %215 = arith.sitofp %214 : vector<1x256xi32> to vector<1x256xf32>
    %c1_i32_91 = arith.constant 1 : i32
    %216 = tpu.dynamic_rotate %215 by %c1_i32_91 dim 1 : vector<1x256xf32>, i32 -> vector<1x256xf32>
    %217 = arith.select %58, %215, %216 : vector<1x256xi1>, vector<1x256xf32>
    %c255_i32_92 = arith.constant 255 : i32
    %218 = tpu.dynamic_rotate %215 by %c255_i32_92 dim 1 : vector<1x256xf32>, i32 -> vector<1x256xf32>
    %219 = arith.select %60, %215, %218 : vector<1x256xi1>, vector<1x256xf32>
    %cst_93 = arith.constant 0.451862752 : f32
    %220 = vector.broadcast %cst_93 : f32 to vector<1x256xf32>
    %221 = arith.mulf %220, %215 : vector<1x256xf32>
    %222 = arith.addf %217, %219 : vector<1x256xf32>
    %cst_94 = arith.constant 0.274068624 : f32
    %223 = vector.broadcast %cst_94 : f32 to vector<1x256xf32>
    %224 = arith.mulf %223, %222 : vector<1x256xf32>
    %225 = arith.addf %221, %224 : vector<1x256xf32>
    %c16_i32_95 = arith.constant 16 : i32
    %226 = tpu.dynamic_rotate %225 by %c16_i32_95 dim 1 : vector<1x256xf32>, i32 -> vector<1x256xf32>
    %227 = arith.select %62, %225, %226 : vector<1x256xi1>, vector<1x256xf32>
    %c240_i32_96 = arith.constant 240 : i32
    %228 = tpu.dynamic_rotate %225 by %c240_i32_96 dim 1 : vector<1x256xf32>, i32 -> vector<1x256xf32>
    %229 = arith.select %64, %225, %228 : vector<1x256xi1>, vector<1x256xf32>
    %cst_97 = arith.constant 0.451862752 : f32
    %230 = vector.broadcast %cst_97 : f32 to vector<1x256xf32>
    %231 = arith.mulf %230, %225 : vector<1x256xf32>
    %232 = arith.addf %227, %229 : vector<1x256xf32>
    %cst_98 = arith.constant 0.274068624 : f32
    %233 = vector.broadcast %cst_98 : f32 to vector<1x256xf32>
    %234 = arith.mulf %233, %232 : vector<1x256xf32>
    %235 = arith.addf %231, %234 : vector<1x256xf32>
    %c1_i32_99 = arith.constant 1 : i32
    %236 = vector.broadcast %c1_i32_99 : i32 to vector<1x256xi32>
    %237 = arith.cmpi eq, %14, %236 : vector<1x256xi32>
    %238 = arith.extui %237 : vector<1x256xi1> to vector<1x256xi32>
    %239 = arith.sitofp %238 : vector<1x256xi32> to vector<1x256xf32>
    %c1_i32_100 = arith.constant 1 : i32
    %240 = tpu.dynamic_rotate %239 by %c1_i32_100 dim 1 : vector<1x256xf32>, i32 -> vector<1x256xf32>
    %241 = arith.select %58, %239, %240 : vector<1x256xi1>, vector<1x256xf32>
    %c255_i32_101 = arith.constant 255 : i32
    %242 = tpu.dynamic_rotate %239 by %c255_i32_101 dim 1 : vector<1x256xf32>, i32 -> vector<1x256xf32>
    %243 = arith.select %60, %239, %242 : vector<1x256xi1>, vector<1x256xf32>
    %cst_102 = arith.constant 0.451862752 : f32
    %244 = vector.broadcast %cst_102 : f32 to vector<1x256xf32>
    %245 = arith.mulf %244, %239 : vector<1x256xf32>
    %246 = arith.addf %241, %243 : vector<1x256xf32>
    %cst_103 = arith.constant 0.274068624 : f32
    %247 = vector.broadcast %cst_103 : f32 to vector<1x256xf32>
    %248 = arith.mulf %247, %246 : vector<1x256xf32>
    %249 = arith.addf %245, %248 : vector<1x256xf32>
    %c16_i32_104 = arith.constant 16 : i32
    %250 = tpu.dynamic_rotate %249 by %c16_i32_104 dim 1 : vector<1x256xf32>, i32 -> vector<1x256xf32>
    %251 = arith.select %62, %249, %250 : vector<1x256xi1>, vector<1x256xf32>
    %c240_i32_105 = arith.constant 240 : i32
    %252 = tpu.dynamic_rotate %249 by %c240_i32_105 dim 1 : vector<1x256xf32>, i32 -> vector<1x256xf32>
    %253 = arith.select %64, %249, %252 : vector<1x256xi1>, vector<1x256xf32>
    %cst_106 = arith.constant 0.451862752 : f32
    %254 = vector.broadcast %cst_106 : f32 to vector<1x256xf32>
    %255 = arith.mulf %254, %249 : vector<1x256xf32>
    %256 = arith.addf %251, %253 : vector<1x256xf32>
    %cst_107 = arith.constant 0.274068624 : f32
    %257 = vector.broadcast %cst_107 : f32 to vector<1x256xf32>
    %258 = arith.mulf %257, %256 : vector<1x256xf32>
    %259 = arith.addf %255, %258 : vector<1x256xf32>
    %c1_i32_108 = arith.constant 1 : i32
    %260 = tpu.dynamic_rotate %211 by %c1_i32_108 dim 0 : vector<8x256xf32>, i32 -> vector<8x256xf32>
    %261 = vector.shape_cast %235 : vector<1x256xf32> to vector<1x256xf32>
    %262 = vector.broadcast %261 : vector<1x256xf32> to vector<8x256xf32>
    %263 = arith.select %67, %262, %260 : vector<8x256xi1>, vector<8x256xf32>
    %c7_i32_109 = arith.constant 7 : i32
    %264 = tpu.dynamic_rotate %211 by %c7_i32_109 dim 0 : vector<8x256xf32>, i32 -> vector<8x256xf32>
    %265 = vector.shape_cast %259 : vector<1x256xf32> to vector<1x256xf32>
    %266 = vector.broadcast %265 : vector<1x256xf32> to vector<8x256xf32>
    %267 = arith.select %69, %266, %264 : vector<8x256xi1>, vector<8x256xf32>
    %cst_110 = arith.constant 0.451862752 : f32
    %268 = vector.broadcast %cst_110 : f32 to vector<8x256xf32>
    %269 = arith.mulf %268, %211 : vector<8x256xf32>
    %270 = arith.addf %263, %267 : vector<8x256xf32>
    %cst_111 = arith.constant 0.274068624 : f32
    %271 = vector.broadcast %cst_111 : f32 to vector<8x256xf32>
    %272 = arith.mulf %271, %270 : vector<8x256xf32>
    %273 = arith.addf %269, %272 : vector<8x256xf32>
    %cst_112 = arith.constant 0.815477371 : f32
    %274 = vector.broadcast %cst_112 : f32 to vector<8x256xf32>
    %275 = arith.mulf %274, %191 : vector<8x256xf32>
    %276 = arith.addf %273, %275 : vector<8x256xf32>
    %cst_113 = arith.constant 0.550819337 : f32
    %277 = vector.broadcast %cst_113 : f32 to vector<8x256xf32>
    %278 = arith.mulf %276, %277 : vector<8x256xf32>
    %279 = arith.mulf %278, %185 : vector<8x256xf32>
    %cst_114 = arith.constant dense<0.000000e+00> : vector<8x1xf32>
    %280 = tpu.matmul %279, %70, %cst_114 {dimension_numbers = #tpu.dot_dimension_numbers<[1], [0], [0], [1], [0, 0, 1, 1], [], []>} : vector<8x256xf32>, vector<256x1xf32>, vector<8x1xf32> -> vector<8x1xf32>
    %281 = arith.addf %182, %280 : vector<8x1xf32>
    %c0_115 = arith.constant 0 : index
    %c2_116 = arith.constant 2 : index
    %c0_117 = arith.constant 0 : index
    %c0_118 = arith.constant 0 : index
    %282 = vector.load %arg3[%c0_115, %c2_116, %c0_117, %c0_118] : memref<1x4x8x256xf32, #tpu.memory_space<vmem>>, vector<1x1x8x256xf32>
    %283 = vector.shape_cast %282 : vector<1x1x8x256xf32> to vector<8x256xf32>
    %284 = arith.subf %283, %81 : vector<8x256xf32>
    %285 = math.exp %284 : vector<8x256xf32>
    %286 = arith.addf %187, %285 : vector<8x256xf32>
    %c2_i32 = arith.constant 2 : i32
    %287 = vector.broadcast %c2_i32 : i32 to vector<8x256xi32>
    %288 = arith.cmpi eq, %4, %287 : vector<8x256xi32>
    %289 = arith.extui %288 : vector<8x256xi1> to vector<8x256xi32>
    %290 = arith.sitofp %289 : vector<8x256xi32> to vector<8x256xf32>
    %c1_i32_119 = arith.constant 1 : i32
    %291 = tpu.dynamic_rotate %290 by %c1_i32_119 dim 1 : vector<8x256xf32>, i32 -> vector<8x256xf32>
    %292 = arith.select %33, %290, %291 : vector<8x256xi1>, vector<8x256xf32>
    %c255_i32_120 = arith.constant 255 : i32
    %293 = tpu.dynamic_rotate %290 by %c255_i32_120 dim 1 : vector<8x256xf32>, i32 -> vector<8x256xf32>
    %294 = arith.select %35, %290, %293 : vector<8x256xi1>, vector<8x256xf32>
    %cst_121 = arith.constant 0.451862752 : f32
    %295 = vector.broadcast %cst_121 : f32 to vector<8x256xf32>
    %296 = arith.mulf %295, %290 : vector<8x256xf32>
    %297 = arith.addf %292, %294 : vector<8x256xf32>
    %cst_122 = arith.constant 0.274068624 : f32
    %298 = vector.broadcast %cst_122 : f32 to vector<8x256xf32>
    %299 = arith.mulf %298, %297 : vector<8x256xf32>
    %300 = arith.addf %296, %299 : vector<8x256xf32>
    %c16_i32_123 = arith.constant 16 : i32
    %301 = tpu.dynamic_rotate %300 by %c16_i32_123 dim 1 : vector<8x256xf32>, i32 -> vector<8x256xf32>
    %302 = arith.select %37, %300, %301 : vector<8x256xi1>, vector<8x256xf32>
    %c240_i32_124 = arith.constant 240 : i32
    %303 = tpu.dynamic_rotate %300 by %c240_i32_124 dim 1 : vector<8x256xf32>, i32 -> vector<8x256xf32>
    %304 = arith.select %39, %300, %303 : vector<8x256xi1>, vector<8x256xf32>
    %cst_125 = arith.constant 0.451862752 : f32
    %305 = vector.broadcast %cst_125 : f32 to vector<8x256xf32>
    %306 = arith.mulf %305, %300 : vector<8x256xf32>
    %307 = arith.addf %302, %304 : vector<8x256xf32>
    %cst_126 = arith.constant 0.274068624 : f32
    %308 = vector.broadcast %cst_126 : f32 to vector<8x256xf32>
    %309 = arith.mulf %308, %307 : vector<8x256xf32>
    %310 = arith.addf %306, %309 : vector<8x256xf32>
    %c2_i32_127 = arith.constant 2 : i32
    %311 = vector.broadcast %c2_i32_127 : i32 to vector<1x256xi32>
    %312 = arith.cmpi eq, %11, %311 : vector<1x256xi32>
    %313 = arith.extui %312 : vector<1x256xi1> to vector<1x256xi32>
    %314 = arith.sitofp %313 : vector<1x256xi32> to vector<1x256xf32>
    %c1_i32_128 = arith.constant 1 : i32
    %315 = tpu.dynamic_rotate %314 by %c1_i32_128 dim 1 : vector<1x256xf32>, i32 -> vector<1x256xf32>
    %316 = arith.select %58, %314, %315 : vector<1x256xi1>, vector<1x256xf32>
    %c255_i32_129 = arith.constant 255 : i32
    %317 = tpu.dynamic_rotate %314 by %c255_i32_129 dim 1 : vector<1x256xf32>, i32 -> vector<1x256xf32>
    %318 = arith.select %60, %314, %317 : vector<1x256xi1>, vector<1x256xf32>
    %cst_130 = arith.constant 0.451862752 : f32
    %319 = vector.broadcast %cst_130 : f32 to vector<1x256xf32>
    %320 = arith.mulf %319, %314 : vector<1x256xf32>
    %321 = arith.addf %316, %318 : vector<1x256xf32>
    %cst_131 = arith.constant 0.274068624 : f32
    %322 = vector.broadcast %cst_131 : f32 to vector<1x256xf32>
    %323 = arith.mulf %322, %321 : vector<1x256xf32>
    %324 = arith.addf %320, %323 : vector<1x256xf32>
    %c16_i32_132 = arith.constant 16 : i32
    %325 = tpu.dynamic_rotate %324 by %c16_i32_132 dim 1 : vector<1x256xf32>, i32 -> vector<1x256xf32>
    %326 = arith.select %62, %324, %325 : vector<1x256xi1>, vector<1x256xf32>
    %c240_i32_133 = arith.constant 240 : i32
    %327 = tpu.dynamic_rotate %324 by %c240_i32_133 dim 1 : vector<1x256xf32>, i32 -> vector<1x256xf32>
    %328 = arith.select %64, %324, %327 : vector<1x256xi1>, vector<1x256xf32>
    %cst_134 = arith.constant 0.451862752 : f32
    %329 = vector.broadcast %cst_134 : f32 to vector<1x256xf32>
    %330 = arith.mulf %329, %324 : vector<1x256xf32>
    %331 = arith.addf %326, %328 : vector<1x256xf32>
    %cst_135 = arith.constant 0.274068624 : f32
    %332 = vector.broadcast %cst_135 : f32 to vector<1x256xf32>
    %333 = arith.mulf %332, %331 : vector<1x256xf32>
    %334 = arith.addf %330, %333 : vector<1x256xf32>
    %c2_i32_136 = arith.constant 2 : i32
    %335 = vector.broadcast %c2_i32_136 : i32 to vector<1x256xi32>
    %336 = arith.cmpi eq, %14, %335 : vector<1x256xi32>
    %337 = arith.extui %336 : vector<1x256xi1> to vector<1x256xi32>
    %338 = arith.sitofp %337 : vector<1x256xi32> to vector<1x256xf32>
    %c1_i32_137 = arith.constant 1 : i32
    %339 = tpu.dynamic_rotate %338 by %c1_i32_137 dim 1 : vector<1x256xf32>, i32 -> vector<1x256xf32>
    %340 = arith.select %58, %338, %339 : vector<1x256xi1>, vector<1x256xf32>
    %c255_i32_138 = arith.constant 255 : i32
    %341 = tpu.dynamic_rotate %338 by %c255_i32_138 dim 1 : vector<1x256xf32>, i32 -> vector<1x256xf32>
    %342 = arith.select %60, %338, %341 : vector<1x256xi1>, vector<1x256xf32>
    %cst_139 = arith.constant 0.451862752 : f32
    %343 = vector.broadcast %cst_139 : f32 to vector<1x256xf32>
    %344 = arith.mulf %343, %338 : vector<1x256xf32>
    %345 = arith.addf %340, %342 : vector<1x256xf32>
    %cst_140 = arith.constant 0.274068624 : f32
    %346 = vector.broadcast %cst_140 : f32 to vector<1x256xf32>
    %347 = arith.mulf %346, %345 : vector<1x256xf32>
    %348 = arith.addf %344, %347 : vector<1x256xf32>
    %c16_i32_141 = arith.constant 16 : i32
    %349 = tpu.dynamic_rotate %348 by %c16_i32_141 dim 1 : vector<1x256xf32>, i32 -> vector<1x256xf32>
    %350 = arith.select %62, %348, %349 : vector<1x256xi1>, vector<1x256xf32>
    %c240_i32_142 = arith.constant 240 : i32
    %351 = tpu.dynamic_rotate %348 by %c240_i32_142 dim 1 : vector<1x256xf32>, i32 -> vector<1x256xf32>
    %352 = arith.select %64, %348, %351 : vector<1x256xi1>, vector<1x256xf32>
    %cst_143 = arith.constant 0.451862752 : f32
    %353 = vector.broadcast %cst_143 : f32 to vector<1x256xf32>
    %354 = arith.mulf %353, %348 : vector<1x256xf32>
    %355 = arith.addf %350, %352 : vector<1x256xf32>
    %cst_144 = arith.constant 0.274068624 : f32
    %356 = vector.broadcast %cst_144 : f32 to vector<1x256xf32>
    %357 = arith.mulf %356, %355 : vector<1x256xf32>
    %358 = arith.addf %354, %357 : vector<1x256xf32>
    %c1_i32_145 = arith.constant 1 : i32
    %359 = tpu.dynamic_rotate %310 by %c1_i32_145 dim 0 : vector<8x256xf32>, i32 -> vector<8x256xf32>
    %360 = vector.shape_cast %334 : vector<1x256xf32> to vector<1x256xf32>
    %361 = vector.broadcast %360 : vector<1x256xf32> to vector<8x256xf32>
    %362 = arith.select %67, %361, %359 : vector<8x256xi1>, vector<8x256xf32>
    %c7_i32_146 = arith.constant 7 : i32
    %363 = tpu.dynamic_rotate %310 by %c7_i32_146 dim 0 : vector<8x256xf32>, i32 -> vector<8x256xf32>
    %364 = vector.shape_cast %358 : vector<1x256xf32> to vector<1x256xf32>
    %365 = vector.broadcast %364 : vector<1x256xf32> to vector<8x256xf32>
    %366 = arith.select %69, %365, %363 : vector<8x256xi1>, vector<8x256xf32>
    %cst_147 = arith.constant 0.451862752 : f32
    %367 = vector.broadcast %cst_147 : f32 to vector<8x256xf32>
    %368 = arith.mulf %367, %310 : vector<8x256xf32>
    %369 = arith.addf %362, %366 : vector<8x256xf32>
    %cst_148 = arith.constant 0.274068624 : f32
    %370 = vector.broadcast %cst_148 : f32 to vector<8x256xf32>
    %371 = arith.mulf %370, %369 : vector<8x256xf32>
    %372 = arith.addf %368, %371 : vector<8x256xf32>
    %cst_149 = arith.constant 0.815477371 : f32
    %373 = vector.broadcast %cst_149 : f32 to vector<8x256xf32>
    %374 = arith.mulf %373, %290 : vector<8x256xf32>
    %375 = arith.addf %372, %374 : vector<8x256xf32>
    %cst_150 = arith.constant 0.550819337 : f32
    %376 = vector.broadcast %cst_150 : f32 to vector<8x256xf32>
    %377 = arith.mulf %375, %376 : vector<8x256xf32>
    %378 = arith.mulf %377, %284 : vector<8x256xf32>
    %cst_151 = arith.constant dense<0.000000e+00> : vector<8x1xf32>
    %379 = tpu.matmul %378, %70, %cst_151 {dimension_numbers = #tpu.dot_dimension_numbers<[1], [0], [0], [1], [0, 0, 1, 1], [], []>} : vector<8x256xf32>, vector<256x1xf32>, vector<8x1xf32> -> vector<8x1xf32>
    %380 = arith.addf %281, %379 : vector<8x1xf32>
    %c0_152 = arith.constant 0 : index
    %c3_153 = arith.constant 3 : index
    %c0_154 = arith.constant 0 : index
    %c0_155 = arith.constant 0 : index
    %381 = vector.load %arg3[%c0_152, %c3_153, %c0_154, %c0_155] : memref<1x4x8x256xf32, #tpu.memory_space<vmem>>, vector<1x1x8x256xf32>
    %382 = vector.shape_cast %381 : vector<1x1x8x256xf32> to vector<8x256xf32>
    %383 = arith.subf %382, %81 : vector<8x256xf32>
    %384 = math.exp %383 : vector<8x256xf32>
    %385 = arith.addf %286, %384 : vector<8x256xf32>
    %c3_i32 = arith.constant 3 : i32
    %386 = vector.broadcast %c3_i32 : i32 to vector<8x256xi32>
    %387 = arith.cmpi eq, %4, %386 : vector<8x256xi32>
    %388 = arith.extui %387 : vector<8x256xi1> to vector<8x256xi32>
    %389 = arith.sitofp %388 : vector<8x256xi32> to vector<8x256xf32>
    %c1_i32_156 = arith.constant 1 : i32
    %390 = tpu.dynamic_rotate %389 by %c1_i32_156 dim 1 : vector<8x256xf32>, i32 -> vector<8x256xf32>
    %391 = arith.select %33, %389, %390 : vector<8x256xi1>, vector<8x256xf32>
    %c255_i32_157 = arith.constant 255 : i32
    %392 = tpu.dynamic_rotate %389 by %c255_i32_157 dim 1 : vector<8x256xf32>, i32 -> vector<8x256xf32>
    %393 = arith.select %35, %389, %392 : vector<8x256xi1>, vector<8x256xf32>
    %cst_158 = arith.constant 0.451862752 : f32
    %394 = vector.broadcast %cst_158 : f32 to vector<8x256xf32>
    %395 = arith.mulf %394, %389 : vector<8x256xf32>
    %396 = arith.addf %391, %393 : vector<8x256xf32>
    %cst_159 = arith.constant 0.274068624 : f32
    %397 = vector.broadcast %cst_159 : f32 to vector<8x256xf32>
    %398 = arith.mulf %397, %396 : vector<8x256xf32>
    %399 = arith.addf %395, %398 : vector<8x256xf32>
    %c16_i32_160 = arith.constant 16 : i32
    %400 = tpu.dynamic_rotate %399 by %c16_i32_160 dim 1 : vector<8x256xf32>, i32 -> vector<8x256xf32>
    %401 = arith.select %37, %399, %400 : vector<8x256xi1>, vector<8x256xf32>
    %c240_i32_161 = arith.constant 240 : i32
    %402 = tpu.dynamic_rotate %399 by %c240_i32_161 dim 1 : vector<8x256xf32>, i32 -> vector<8x256xf32>
    %403 = arith.select %39, %399, %402 : vector<8x256xi1>, vector<8x256xf32>
    %cst_162 = arith.constant 0.451862752 : f32
    %404 = vector.broadcast %cst_162 : f32 to vector<8x256xf32>
    %405 = arith.mulf %404, %399 : vector<8x256xf32>
    %406 = arith.addf %401, %403 : vector<8x256xf32>
    %cst_163 = arith.constant 0.274068624 : f32
    %407 = vector.broadcast %cst_163 : f32 to vector<8x256xf32>
    %408 = arith.mulf %407, %406 : vector<8x256xf32>
    %409 = arith.addf %405, %408 : vector<8x256xf32>
    %c3_i32_164 = arith.constant 3 : i32
    %410 = vector.broadcast %c3_i32_164 : i32 to vector<1x256xi32>
    %411 = arith.cmpi eq, %11, %410 : vector<1x256xi32>
    %412 = arith.extui %411 : vector<1x256xi1> to vector<1x256xi32>
    %413 = arith.sitofp %412 : vector<1x256xi32> to vector<1x256xf32>
    %c1_i32_165 = arith.constant 1 : i32
    %414 = tpu.dynamic_rotate %413 by %c1_i32_165 dim 1 : vector<1x256xf32>, i32 -> vector<1x256xf32>
    %415 = arith.select %58, %413, %414 : vector<1x256xi1>, vector<1x256xf32>
    %c255_i32_166 = arith.constant 255 : i32
    %416 = tpu.dynamic_rotate %413 by %c255_i32_166 dim 1 : vector<1x256xf32>, i32 -> vector<1x256xf32>
    %417 = arith.select %60, %413, %416 : vector<1x256xi1>, vector<1x256xf32>
    %cst_167 = arith.constant 0.451862752 : f32
    %418 = vector.broadcast %cst_167 : f32 to vector<1x256xf32>
    %419 = arith.mulf %418, %413 : vector<1x256xf32>
    %420 = arith.addf %415, %417 : vector<1x256xf32>
    %cst_168 = arith.constant 0.274068624 : f32
    %421 = vector.broadcast %cst_168 : f32 to vector<1x256xf32>
    %422 = arith.mulf %421, %420 : vector<1x256xf32>
    %423 = arith.addf %419, %422 : vector<1x256xf32>
    %c16_i32_169 = arith.constant 16 : i32
    %424 = tpu.dynamic_rotate %423 by %c16_i32_169 dim 1 : vector<1x256xf32>, i32 -> vector<1x256xf32>
    %425 = arith.select %62, %423, %424 : vector<1x256xi1>, vector<1x256xf32>
    %c240_i32_170 = arith.constant 240 : i32
    %426 = tpu.dynamic_rotate %423 by %c240_i32_170 dim 1 : vector<1x256xf32>, i32 -> vector<1x256xf32>
    %427 = arith.select %64, %423, %426 : vector<1x256xi1>, vector<1x256xf32>
    %cst_171 = arith.constant 0.451862752 : f32
    %428 = vector.broadcast %cst_171 : f32 to vector<1x256xf32>
    %429 = arith.mulf %428, %423 : vector<1x256xf32>
    %430 = arith.addf %425, %427 : vector<1x256xf32>
    %cst_172 = arith.constant 0.274068624 : f32
    %431 = vector.broadcast %cst_172 : f32 to vector<1x256xf32>
    %432 = arith.mulf %431, %430 : vector<1x256xf32>
    %433 = arith.addf %429, %432 : vector<1x256xf32>
    %c3_i32_173 = arith.constant 3 : i32
    %434 = vector.broadcast %c3_i32_173 : i32 to vector<1x256xi32>
    %435 = arith.cmpi eq, %14, %434 : vector<1x256xi32>
    %436 = arith.extui %435 : vector<1x256xi1> to vector<1x256xi32>
    %437 = arith.sitofp %436 : vector<1x256xi32> to vector<1x256xf32>
    %c1_i32_174 = arith.constant 1 : i32
    %438 = tpu.dynamic_rotate %437 by %c1_i32_174 dim 1 : vector<1x256xf32>, i32 -> vector<1x256xf32>
    %439 = arith.select %58, %437, %438 : vector<1x256xi1>, vector<1x256xf32>
    %c255_i32_175 = arith.constant 255 : i32
    %440 = tpu.dynamic_rotate %437 by %c255_i32_175 dim 1 : vector<1x256xf32>, i32 -> vector<1x256xf32>
    %441 = arith.select %60, %437, %440 : vector<1x256xi1>, vector<1x256xf32>
    %cst_176 = arith.constant 0.451862752 : f32
    %442 = vector.broadcast %cst_176 : f32 to vector<1x256xf32>
    %443 = arith.mulf %442, %437 : vector<1x256xf32>
    %444 = arith.addf %439, %441 : vector<1x256xf32>
    %cst_177 = arith.constant 0.274068624 : f32
    %445 = vector.broadcast %cst_177 : f32 to vector<1x256xf32>
    %446 = arith.mulf %445, %444 : vector<1x256xf32>
    %447 = arith.addf %443, %446 : vector<1x256xf32>
    %c16_i32_178 = arith.constant 16 : i32
    %448 = tpu.dynamic_rotate %447 by %c16_i32_178 dim 1 : vector<1x256xf32>, i32 -> vector<1x256xf32>
    %449 = arith.select %62, %447, %448 : vector<1x256xi1>, vector<1x256xf32>
    %c240_i32_179 = arith.constant 240 : i32
    %450 = tpu.dynamic_rotate %447 by %c240_i32_179 dim 1 : vector<1x256xf32>, i32 -> vector<1x256xf32>
    %451 = arith.select %64, %447, %450 : vector<1x256xi1>, vector<1x256xf32>
    %cst_180 = arith.constant 0.451862752 : f32
    %452 = vector.broadcast %cst_180 : f32 to vector<1x256xf32>
    %453 = arith.mulf %452, %447 : vector<1x256xf32>
    %454 = arith.addf %449, %451 : vector<1x256xf32>
    %cst_181 = arith.constant 0.274068624 : f32
    %455 = vector.broadcast %cst_181 : f32 to vector<1x256xf32>
    %456 = arith.mulf %455, %454 : vector<1x256xf32>
    %457 = arith.addf %453, %456 : vector<1x256xf32>
    %c1_i32_182 = arith.constant 1 : i32
    %458 = tpu.dynamic_rotate %409 by %c1_i32_182 dim 0 : vector<8x256xf32>, i32 -> vector<8x256xf32>
    %459 = vector.shape_cast %433 : vector<1x256xf32> to vector<1x256xf32>
    %460 = vector.broadcast %459 : vector<1x256xf32> to vector<8x256xf32>
    %461 = arith.select %67, %460, %458 : vector<8x256xi1>, vector<8x256xf32>
    %c7_i32_183 = arith.constant 7 : i32
    %462 = tpu.dynamic_rotate %409 by %c7_i32_183 dim 0 : vector<8x256xf32>, i32 -> vector<8x256xf32>
    %463 = vector.shape_cast %457 : vector<1x256xf32> to vector<1x256xf32>
    %464 = vector.broadcast %463 : vector<1x256xf32> to vector<8x256xf32>
    %465 = arith.select %69, %464, %462 : vector<8x256xi1>, vector<8x256xf32>
    %cst_184 = arith.constant 0.451862752 : f32
    %466 = vector.broadcast %cst_184 : f32 to vector<8x256xf32>
    %467 = arith.mulf %466, %409 : vector<8x256xf32>
    %468 = arith.addf %461, %465 : vector<8x256xf32>
    %cst_185 = arith.constant 0.274068624 : f32
    %469 = vector.broadcast %cst_185 : f32 to vector<8x256xf32>
    %470 = arith.mulf %469, %468 : vector<8x256xf32>
    %471 = arith.addf %467, %470 : vector<8x256xf32>
    %cst_186 = arith.constant 0.815477371 : f32
    %472 = vector.broadcast %cst_186 : f32 to vector<8x256xf32>
    %473 = arith.mulf %472, %389 : vector<8x256xf32>
    %474 = arith.addf %471, %473 : vector<8x256xf32>
    %cst_187 = arith.constant 0.550819337 : f32
    %475 = vector.broadcast %cst_187 : f32 to vector<8x256xf32>
    %476 = arith.mulf %474, %475 : vector<8x256xf32>
    %477 = arith.mulf %476, %383 : vector<8x256xf32>
    %cst_188 = arith.constant dense<0.000000e+00> : vector<8x1xf32>
    %478 = tpu.matmul %477, %70, %cst_188 {dimension_numbers = #tpu.dot_dimension_numbers<[1], [0], [0], [1], [0, 0, 1, 1], [], []>} : vector<8x256xf32>, vector<256x1xf32>, vector<8x1xf32> -> vector<8x1xf32>
    %479 = arith.addf %380, %478 : vector<8x1xf32>
    %480 = math.log %385 : vector<8x256xf32>
    %cst_189 = arith.constant dense<0.000000e+00> : vector<8x1xf32>
    %481 = tpu.matmul %480, %70, %cst_189 {dimension_numbers = #tpu.dot_dimension_numbers<[1], [0], [0], [1], [0, 0, 1, 1], [], []>} : vector<8x256xf32>, vector<256x1xf32>, vector<8x1xf32> -> vector<8x1xf32>
    %482 = arith.subf %481, %479 : vector<8x1xf32>
    %483 = vector.shape_cast %482 : vector<8x1xf32> to vector<1x8x1xf32>
    %c0_190 = arith.constant 0 : index
    %c0_191 = arith.constant 0 : index
    %c0_192 = arith.constant 0 : index
    %484 = vector.load %arg4[%c0_190, %c0_191, %c0_192] : memref<1x8x1xf32, #tpu.memory_space<vmem>>, vector<1x8x1xf32>
    tpu.vector_store %arg4[%c0_190, %c0_191, %c0_192], %483 {strides = array<i32>} : memref<1x8x1xf32, #tpu.memory_space<vmem>>, vector<1x8x1xf32>,
    return
  }
  func.func @transform_0(%arg0: i32, %arg1: i32) -> (i32, i32, i32) {
    %c0_i32 = arith.constant 0 : i32
    %c0_i32_0 = arith.constant 0 : i32
    %c0_i32_1 = arith.constant 0 : i32
    return %arg0, %c0_i32, %c0_i32_0 : i32, i32, i32
  }
  func.func @transform_1(%arg0: i32, %arg1: i32) -> (i32, i32, i32, i32) {
    %c0_i32 = arith.constant 0 : i32
    %c0_i32_0 = arith.constant 0 : i32
    %c0_i32_1 = arith.constant 0 : i32
    return %arg0, %c0_i32, %arg1, %c0_i32_0 : i32, i32, i32, i32
  }
  func.func @transform_2(%arg0: i32, %arg1: i32) -> (i32, i32, i32) {
    %c0_i32 = arith.constant 0 : i32
    %c0_i32_0 = arith.constant 0 : i32
    return %arg0, %arg1, %c0_i32 : i32, i32, i32
  }
}

</mosaic_0001>

<llo_original>
// kernel: tpu_custom_call.1
$region0: #{tpu_custom_call.1}
  #allocation0 [shape = 'u32[]', space=smem, size = 0x4, offset = 0x4, fixed_abs, tag = 'smem constant byte address 0x4 - core index']
  #allocation1 [shape = 'u32[72,128]{1,0:T(1,128)}', space=vmem, size = 0x9000, scoped, tag = 'internal scratch']
  %s0 = inlined_call_operand.hbm [shape: s32[2,16,256], index: 0, kind: input, shape index: {}]
  %s1 = inlined_call_operand.hbm [shape: f32[2,4,16,256], index: 1, kind: input, shape index: {}]
  %s2 = inlined_call_operand.vmem [shape: f32[2,16,1], index: 2, kind: output, shape index: {}]
  %s3 = sld [smem:[#allocation0]]
  $region49: #{tpu_custom_call.1} parent=0
    _
  %s5 = ssub.s32 1, %s3
  %s6 = scalar_select 0, %s5, %s3
  $region1: #{tpu_custom_call.1} parent=0
    #allocation2 [shape = 'u8[32768]{0}', space=vmem, size = 0x8000, scoped, tag = 'input window, operand 0']
    #allocation3 [shape = 's32[2]{0}', space=sflag, size = 0x8, scoped, tag = 'scoped memory for tpu_custom_call.1']
    #allocation4 [shape = 'u8[65536]{0}', space=vmem, size = 0x10000, scoped, tag = 'input window, operand 1']
    #allocation5 [shape = 's32[2]{0}', space=sflag, size = 0x8, scoped, tag = 'scoped memory for tpu_custom_call.1']
    %7 = vsyncpa [#allocation3], 0
    %s8 = scalar_lea.sflag [#allocation3], 1
    %9 = vsyncpa %s8, 0
    %10 = vsyncpa [#allocation5], 0
    %s11 = scalar_lea.sflag [#allocation5], 1
    %12 = vsyncpa %s11, 0
    loop: start=0, step=1, limit=6
    $region2: #{tpu_custom_call.1} parent=1 // loop_pre_header
      _
    $region3: #{tpu_custom_call.1} parent=1 // loop_header
      %s14 = sphi 0, %s18
      %p15 = scmp.ge.s32.totalorder %s14, 6
      %s21 = sphi 0, %s33
      %s22 = sphi 0, %s29
      %s23 = sphi 0, %s21
      %s24 = sphi 0, %s22
      %s25 = sphi 0, %s23
      %s26 = sphi 0, %s24
      %s36 = sphi 0, %s38
      %s39 = sphi 0, %s36
      %s40 = sphi 0, %s39
      %s56 = sphi 0, %s40
      %s64 = sphi 0, %s66
      %s67 = sphi 0, %s64
      %s68 = sphi 0, %s67
      %s84 = sphi 0, %s68
      %s92 = sphi 0, %s94
      %s95 = sphi 0, %s92
      %s96 = sphi 0, %s95
      %s112 = sphi 0, %s96
    $region4: #{tpu_custom_call.1} parent=1 // loop_header_branch
      %17 = sbr.rel (%p15) target = $region8
    $region5: #{tpu_custom_call.1} parent=1 // loop_body
      %s19 = ssub.s32 %s14, 1
      %s20 = ssub.s32 %s14, 2
      %s27 = sadd.s32 1, %s22
      %p28 = scmp.ge.s32.totalorder %s27, 2
      %s29 = scalar_select %p28, 0, %s27
      %s30 = sadd.s32 1, %s21
      %s31 = scalar_select %p28, %s30, %s21
      %p32 = scmp.ge.s32.totalorder %s31, 2
      %s33 = scalar_select %p32, 0, %s31
      %s34 = ssub.s32 %s21, %s33
      %p35 = scmp.eq.s32.totalorder %s34, 0
      %s37 = sadd.s32 %s36, 1
      %s38 = scalar_select %p35, %s36, %s37
      %p41 = pneg %p35
      %p42 = scmp.eq.s32.totalorder %s14, 3
      %p43 = por %p41, %p42
      %p44 = scmp.ne.s32.totalorder %s36, %s39
      %p45 = scmp.eq.s32.totalorder %s14, 0
      %p46 = por %p44, %p45
      %p47 = scmp.ne.s32.totalorder %s36, %s39
      %p48 = scmp.eq.s32.totalorder %s19, 3
      %p49 = por %p47, %p48
      %p50 = scmp.ne.s32.totalorder %s39, %s40
      %p51 = scmp.eq.s32.totalorder %s19, 0
      %p52 = por %p50, %p51
      %p53 = scmp.ne.s32.totalorder %s39, %s40
      %p54 = scmp.eq.s32.totalorder %s20, 3
      %p55 = por %p53, %p54
      %p57 = scmp.ne.s32.totalorder %s40, %s56
      %p58 = scmp.eq.s32.totalorder %s20, 0
      %p59 = por %p57, %p58
      %s60 = ssub.s32 %s21, %s33
      %s61 = ssub.s32 %s22, %s29
      %s62 = sor.u32 %s60, %s61
      %p63 = scmp.eq.s32.totalorder %s62, 0
      %s65 = sadd.s32 %s64, 1
      %s66 = scalar_select %p63, %s64, %s65
      %p69 = pneg %p63
      %p70 = scmp.eq.s32.totalorder %s14, 3
      %p71 = por %p69, %p70
      %p72 = scmp.ne.s32.totalorder %s64, %s67
      %p73 = scmp.eq.s32.totalorder %s14, 0
      %p74 = por %p72, %p73
      %p75 = scmp.ne.s32.totalorder %s64, %s67
      %p76 = scmp.eq.s32.totalorder %s19, 3
      %p77 = por %p75, %p76
      %p78 = scmp.ne.s32.totalorder %s67, %s68
      %p79 = scmp.eq.s32.totalorder %s19, 0
      %p80 = por %p78, %p79
      %p81 = scmp.ne.s32.totalorder %s67, %s68
      %p82 = scmp.eq.s32.totalorder %s20, 3
      %p83 = por %p81, %p82
      %p85 = scmp.ne.s32.totalorder %s68, %s84
      %p86 = scmp.eq.s32.totalorder %s20, 0
      %p87 = por %p85, %p86
      %s88 = ssub.s32 %s21, %s33
      %s89 = ssub.s32 %s22, %s29
      %s90 = sor.u32 %s88, %s89
      %p91 = scmp.eq.s32.totalorder %s90, 0
      %s93 = sadd.s32 %s92, 1
      %s94 = scalar_select %p91, %s92, %s93
      %p97 = pneg %p91
      %p98 = scmp.eq.s32.totalorder %s14, 3
      %p99 = por %p97, %p98
      %p100 = scmp.ne.s32.totalorder %s92, %s95
      %p101 = scmp.eq.s32.totalorder %s14, 0
      %p102 = por %p100, %p101
      %p103 = scmp.ne.s32.totalorder %s92, %s95
      %p104 = scmp.eq.s32.totalorder %s19, 3
      %p105 = por %p103, %p104
      %p106 = scmp.ne.s32.totalorder %s95, %s96
      %p107 = scmp.eq.s32.totalorder %s19, 0
      %p108 = por %p106, %p107
      %p109 = scmp.ne.s32.totalorder %s95, %s96
      %p110 = scmp.eq.s32.totalorder %s20, 3
      %p111 = por %p109, %p110
      %p113 = scmp.ne.s32.totalorder %s96, %s112
      %p114 = scmp.eq.s32.totalorder %s20, 0
      %p115 = por %p113, %p114
      %p116 = scmp.le.s32.totalorder 1, %s14
      %p117 = scmp.lt.s32.totalorder %s14, 5
      %p118 = pnand %p116, %p117
      %p119 = pneg %p118
      // Predicated region
      $region9: #{tpu_custom_call.1} parent=5 // pred_check
        _
      $region10: #{tpu_custom_call.1} parent=5 // pred_check_branch
        %121 = sbr.rel (%p118) target = $region12
      $region11: #{tpu_custom_call.1} parent=5 // pred_region
        %s122 = ssub.s32 %s14, 1
      $region12: #{tpu_custom_call.1} parent=5 // pred_fallthru
        _
      %p123 = scmp.lt.s32.totalorder %s14, 4
      // Predicated region
      $region13: #{tpu_custom_call.1} parent=5 // pred_check
        %p124 = pneg %p123
      $region14: #{tpu_custom_call.1} parent=5 // pred_check_branch
        %126 = sbr.rel (%p124) target = $region16
      $region15: #{tpu_custom_call.1} parent=5 // pred_region
        // Predicated region
        $region17: #{tpu_custom_call.1} parent=15 // pred_check
          %p127 = pneg %p46
        $region18: #{tpu_custom_call.1} parent=15 // pred_check_branch
          %129 = sbr.rel (%p127) target = $region20
        $region19: #{tpu_custom_call.1} parent=15 // pred_region
          %s130 = sand.u32 %s36, 1
          %s131 = scalar_lea.sflag [#allocation3], %s130
          %s132 = sand.u32 %s36, 1
          %s133 = smul.addr %s132, 32
          %s134 = scalar_lea.vmem [#allocation2], %s133
          %136 = vsyncadd %s131, 0
          %s137 = smul.addr %s21, 4
          %s138 = smul.addr %s137, 8
          %s139 = scalar_lea.hbm %s0, %s138
          %s140 = sshll.u32 %s139, 4
          %s141 = int_to_ptr.hbm [resolvable:$true] %s140
          %s142 = sshll.u32 %s134, 4
          %s143 = int_to_ptr.vmem [resolvable:$true] %s142
          %148 = dma.hbm_to_vmem [thread:$0]  %s141, 512, %s143, %s131, 256, 256, 16
        $region20: #{tpu_custom_call.1} parent=15 // pred_fallthru
          _
        // Predicated region
        $region21: #{tpu_custom_call.1} parent=15 // pred_check
          %p149 = pneg %p74
        $region22: #{tpu_custom_call.1} parent=15 // pred_check_branch
          %151 = sbr.rel (%p149) target = $region24
        $region23: #{tpu_custom_call.1} parent=15 // pred_region
          %s152 = sand.u32 %s64, 1
          %s153 = scalar_lea.sflag [#allocation5], %s152
          %s154 = sand.u32 %s64, 1
          %s155 = smul.addr %s154, 64
          %s156 = scalar_lea.vmem [#allocation4], %s155
          %158 = vsyncadd %s153, 0
          %s159 = smul.addr %s22, 2
          %s160 = smul.addr %s21, 16
          %s161 = sadd.s32 %s159, %s160
          %s162 = smul.addr %s161, 8
          %s163 = scalar_lea.hbm %s1, %s162
          %s164 = sshll.u32 %s163, 4
          %s165 = int_to_ptr.hbm [resolvable:$true] %s164
          %s166 = sshll.u32 %s156, 4
          %s167 = int_to_ptr.vmem [resolvable:$true] %s166
          %172 = dma.hbm_to_vmem [thread:$0]  %s165, 1024, %s167, %s153, 512, 256, 16
        $region24: #{tpu_custom_call.1} parent=15 // pred_fallthru
          _
      $region16: #{tpu_custom_call.1} parent=5 // pred_fallthru
        _
      %p173 = scmp.le.s32.totalorder 1, %s14
      %p174 = scmp.lt.s32.totalorder %s14, 5
      %p175 = pnand %p173, %p174
      %p176 = pneg %p175
      // Predicated region
      $region25: #{tpu_custom_call.1} parent=5 // pred_check
        _
      $region26: #{tpu_custom_call.1} parent=5 // pred_check_branch
        %178 = sbr.rel (%p175) target = $region28
      $region27: #{tpu_custom_call.1} parent=5 // pred_region
        %s179 = ssub.s32 %s14, 1
        %s180 = sand.u32 %s39, 1
        %s181 = scalar_lea.sflag [#allocation3], %s180
        %s182 = sand.u32 %s39, 1
        %s183 = smul.addr %s182, 32
        %s184 = scalar_lea.vmem [#allocation2], %s183
        // Predicated region
        $region29: #{tpu_custom_call.1} parent=27 // pred_check
          %p185 = pneg %p52
        $region30: #{tpu_custom_call.1} parent=27 // pred_check_branch
          %187 = sbr.rel (%p185) target = $region32
        $region31: #{tpu_custom_call.1} parent=27 // pred_region
          %189 = dma.done %s181, 512
        $region32: #{tpu_custom_call.1} parent=27 // pred_fallthru
          _
        %s190 = sand.u32 %s67, 1
        %s191 = scalar_lea.sflag [#allocation5], %s190
        %s192 = sand.u32 %s67, 1
        %s193 = smul.addr %s192, 64
        %s194 = scalar_lea.vmem [#allocation4], %s193
        // Predicated region
        $region33: #{tpu_custom_call.1} parent=27 // pred_check
          %p195 = pneg %p80
        $region34: #{tpu_custom_call.1} parent=27 // pred_check_branch
          %197 = sbr.rel (%p195) target = $region36
        $region35: #{tpu_custom_call.1} parent=27 // pred_region
          %199 = dma.done %s191, 1024
        $region36: #{tpu_custom_call.1} parent=27 // pred_fallthru
          _
        %s200 = sand.u32 %s39, 1
        %s201 = scalar_lea.sflag [#allocation3], %s200
        %s202 = sand.u32 %s39, 1
        %s203 = smul.addr %s202, 32
        %s204 = scalar_lea.vmem [#allocation2], %s203
        %p205 = pneg %p52
        %p206 = pneg %p49
        %s207 = sand.u32 %s67, 1
        %s208 = scalar_lea.sflag [#allocation5], %s207
        %s209 = sand.u32 %s67, 1
        %s210 = smul.addr %s209, 64
        %s211 = scalar_lea.vmem [#allocation4], %s210
        %p212 = pneg %p80
        %p213 = pneg %p77
        %p214 = pneg %p108
        %p215 = pneg %p105
        %p216 = scmp.lt.s32.totalorder %s23, 1
        %s217 = scalar_select %p216, %s23, 1
        %p218 = scmp.lt.s32.totalorder %s24, 1
        %s219 = scalar_select %p218, %s24, 1
        %s220 = smul.addr %s217, 2
        %s221 = sadd.s32 %s219, %s220
        %s222 = smul.addr %s221, 8
        %s223 = scalar_lea.vmem %s2, %s222
        %p224 = scmp.lt.s32.totalorder %s23, 1
        %s225 = scalar_select %p224, %s23, 1
        %p226 = scmp.lt.s32.totalorder %s24, 1
        %s227 = scalar_select %p226, %s24, 1
        %s228 = smul.addr %s225, 2
        %s229 = sadd.s32 %s227, %s228
        %s230 = smul.addr %s229, 8
        %s231 = scalar_lea.vmem %s2, %s230
        %s232 = smul.u32 %s24, 8
        %s233 = sshra.s32 %s232, 3
        %s234 = sand.u32 %s232, 7
        %s235 = smul.u32 %s233, 2
        %s236 = smul.addr %s235, 8
        %s237 = scalar_lea.vmem %s184, %s236 [#allocation2]
        %v238 = vld [vmem:[%s237] sm:$0xff]
        %v239 = vld [vmem:[%s237 + $0x8] sm:$0xff]
        %s240 = ssub.s32 %s232, 1
        %p241 = scmp.gt.s32.totalorder %s240, 0
        %s242 = scalar_select %p241, %s240, 0
        %s243 = sadd.s32 %s232, 8
        %p244 = scmp.lt.s32.totalorder %s243, 15
        %s245 = scalar_select %p244, %s243, 15
        %s246 = sshra.s32 %s242, 3
        %s247 = sand.u32 %s242, 7
        %s248 = sshra.s32 %s242, 3
        %s249 = sand.u32 %s242, 7
        %s250 = smul.u32 %s246, 2
        %s251 = smul.u32 %s250, 8
        %s252 = sadd.s32 %s251, %s249
        %s253 = scalar_lea.vmem %s184, %s252 [#allocation2]
        %v254 = vld [vmem:[%s253] ss:$8 sm:$0x3]
        %s255 = sshra.s32 %s245, 3
        %s256 = sand.u32 %s245, 7
        %s257 = sshra.s32 %s245, 3
        %s258 = sand.u32 %s245, 7
        %s259 = smul.u32 %s255, 2
        %s260 = smul.u32 %s259, 8
        %s261 = sadd.s32 %s260, %s258
        %s262 = scalar_lea.vmem %s184, %s261 [#allocation2]
        %v263 = vld [vmem:[%s262] ss:$8 sm:$0x3]
        %v264 = vlaneseq
        %v265 = vand.u32 %v264, 127
        %v266 = vadd.s32 %v265, 128
        %vm267 = vcmp.lt.s32.totalorder %v265, 0
        %v268 = vsub.s32 0, %v265
        %v269 = vsel %vm267, %v268, %v265
        %v270 = vshrl.u32 %v269, 4
        %v271 = vand.u32 %v269, 15
        %v272 = vsub.s32 0, %v271
        %v273 = vsel %vm267, %v272, %v271
        %vm274 = vcmp.lt.s32.totalorder %v266, 0
        %v275 = vsub.s32 0, %v266
        %v276 = vsel %vm274, %v275, %v266
        %v277 = vshrl.u32 %v276, 4
        %v278 = vand.u32 %v276, 15
        %v279 = vsub.s32 0, %v278
        %v280 = vsel %vm274, %v279, %v278
        %vm281 = vcmp.ne.s32.totalorder %v273, 0
        %vm282 = vcmp.ne.s32.totalorder %v280, 0
        %vm283 = vcmp.lt.s32.totalorder %v273, 0
        %vm284 = vcmp.lt.s32.totalorder %v280, 0
        %vm285 = vmand %vm283, %vm281
        %vm286 = vmand %vm284, %vm282
        %v287 = vadd.s32 %v273, 16
        %v288 = vadd.s32 %v280, 16
        %v289 = vsel %vm285, %v287, %v273
        %v290 = vsel %vm286, %v288, %v280
        %vm291 = vcmp.eq.s32.totalorder %v289, 0
        %vm292 = vcmp.eq.s32.totalorder %v290, 0
        %vm293 = vcmp.eq.s32.totalorder %v289, 15
        %vm294 = vcmp.eq.s32.totalorder %v290, 15
        %vm295 = vcmp.lt.s32.totalorder %v265, 16
        %vm296 = vcmp.lt.s32.totalorder %v266, 16
        %vm297 = vcmp.ge.s32.totalorder %v265, 240
        %vm298 = vcmp.ge.s32.totalorder %v266, 240
        %v299 = vlaneseq
        %v300 = vshrl.u32 %v299, 7
        %vm301 = vcmp.eq.s32.totalorder %v300, 0
        %vm302 = vcmp.eq.s32.totalorder %v300, 7
        %v303 = vld [vmem:[%s194] sm:$0xff]
        %v304 = vld [vmem:[%s194 + $0x8] sm:$0xff]
        %s305 = scalar_lea.vmem %s194, 16 [#allocation4]
        %v306 = vld [vmem:[%s305] sm:$0xff]
        %v307 = vld [vmem:[%s305 + $0x8] sm:$0xff]
        %v308 = vmax.f32 %v303, %v306
        %v309 = vmax.f32 %v304, %v307
        %s310 = scalar_lea.vmem %s194, 32 [#allocation4]
        %v311 = vld [vmem:[%s310] sm:$0xff]
        %v312 = vld [vmem:[%s310 + $0x8] sm:$0xff]
        %v313 = vmax.f32 %v308, %v311
        %v314 = vmax.f32 %v309, %v312
        %s315 = scalar_lea.vmem %s194, 48 [#allocation4]
        %v316 = vld [vmem:[%s315] sm:$0xff]
        %v317 = vld [vmem:[%s315 + $0x8] sm:$0xff]
        %v318 = vmax.f32 %v313, %v316
        %v319 = vmax.f32 %v314, %v317
        %v320 = vsub.f32 %v303, %v318
        %v321 = vsub.f32 %v304, %v319
        %v322 = vmul.f32 %v320, 1.442695
        %v323 = vpow.pop %v322
        %v324 = vmul.f32 %v321, 1.442695
        %v325 = vpow.pop %v324
        %v326 = vadd.f32 %v323, 0.0
        %v327 = vadd.f32 %v325, 0.0
        %vm328 = vcmp.eq.s32.totalorder %v238, 0
        %vm329 = vcmp.eq.s32.totalorder %v239, 0
        %v330 = vsel %vm328, 1, 0
        %v331 = vsel %vm329, 1, 0
        %v332 = vcvt.s32.f32 %v330
        %v333 = vcvt.s32.f32 %v331
        %334 = vrot.lane.b32.xlu0 %v332, 1
        %v335 = vpop.permute.xlu0 %334
        %336 = vrot.lane.b32.xlu0 %v333, 1
        %v337 = vpop.permute.xlu0 %336
        %vm338 = vcmp.lt.s32.totalorder %v265, 1
        %v339 = vsel %vm338, %v335, %v337
        %v340 = vsel %vm338, %v337, %v335
        %v341 = vsel %vm291, %v332, %v340
        %v342 = vsel %vm292, %v333, %v339
        %343 = vrot.lane.b32.xlu0 %v332, 127
        %v344 = vpop.permute.xlu0 %343
        %345 = vrot.lane.b32.xlu0 %v333, 127
        %v346 = vpop.permute.xlu0 %345
        %vm347 = vcmp.lt.s32.totalorder %v265, 127
        %v348 = vsel %vm347, %v344, %v346
        %v349 = vsel %vm347, %v346, %v344
        %v350 = vsel %vm293, %v332, %v348
        %v351 = vsel %vm294, %v333, %v349
        %v352 = vmul.f32 %v332, 0.45186275
        %v353 = vmul.f32 %v333, 0.45186275
        %v354 = vadd.f32 %v341, %v350
        %v355 = vadd.f32 %v342, %v351
        %v356 = vmul.f32 %v354, 0.27406862
        %v357 = vmul.f32 %v355, 0.27406862
        %v358 = vadd.f32 %v352, %v356
        %v359 = vadd.f32 %v353, %v357
        %360 = vrot.lane.b32.xlu0 %v358, 16
        %v361 = vpop.permute.xlu0 %360
        %362 = vrot.lane.b32.xlu0 %v359, 16
        %v363 = vpop.permute.xlu0 %362
        %v364 = vsel %vm295, %v361, %v363
        %v365 = vsel %vm295, %v363, %v361
        %v366 = vsel %vm295, %v358, %v365
        %v367 = vsel %vm296, %v359, %v364
        %368 = vrot.lane.b32.xlu0 %v358, 112
        %v369 = vpop.permute.xlu0 %368
        %370 = vrot.lane.b32.xlu0 %v359, 112
        %v371 = vpop.permute.xlu0 %370
        %vm372 = vcmp.lt.s32.totalorder %v265, 112
        %v373 = vsel %vm372, %v369, %v371
        %v374 = vsel %vm372, %v371, %v369
        %v375 = vsel %vm297, %v358, %v373
        %v376 = vsel %vm298, %v359, %v374
        %v377 = vmul.f32 %v358, 0.45186275
        %v378 = vmul.f32 %v359, 0.45186275
        %v379 = vadd.f32 %v366, %v375
        %v380 = vadd.f32 %v367, %v376
        %v381 = vmul.f32 %v379, 0.27406862
        %v382 = vmul.f32 %v380, 0.27406862
        %v383 = vadd.f32 %v377, %v381
        %v384 = vadd.f32 %v378, %v382
        %vm385 = vcmp.eq.s32.totalorder %v254, 0
        %v386 = vsel %vm385, 1, 0
        %v387 = vcvt.s32.f32 %v386
        %v389 = vperm.slane %v387, 0
        %v390 = vperm.slane %v387, 1
        %393 = vrot.lane.b32.xlu0 %v389, 1
        %v394 = vpop.permute.xlu0 %393
        %395 = vrot.lane.b32.xlu0 %v390, 1
        %v396 = vpop.permute.xlu0 %395
        %v397 = vsel %vm338, %v394, %v396
        %v398 = vsel %vm338, %v396, %v394
        %v399 = vsel %vm291, %v389, %v398
        %v400 = vsel %vm292, %v390, %v397
        %401 = vrot.lane.b32.xlu0 %v389, 127
        %v402 = vpop.permute.xlu0 %401
        %403 = vrot.lane.b32.xlu0 %v390, 127
        %v404 = vpop.permute.xlu0 %403
        %v405 = vsel %vm347, %v402, %v404
        %v406 = vsel %vm347, %v404, %v402
        %v407 = vsel %vm293, %v389, %v405
        %v408 = vsel %vm294, %v390, %v406
        %v409 = vmul.f32 %v387, 0.45186275
        %v410 = vadd.f32 %v399, %v407
        %v411 = vadd.f32 %v400, %v408
        %v412 = vmul.f32 %v410, 0.27406862
        %v413 = vmul.f32 %v411, 0.27406862
        %v416 = vrot.slane %v413, 7
        %vm417 = vcmask 1040384
        %v418 = vsel %vm417, %v412, %v416
        %v420 = vadd.f32 %v409, %v418
        %v422 = vperm.slane %v420, 0
        %v423 = vperm.slane %v420, 1
        %426 = vrot.lane.b32.xlu0 %v422, 16
        %v427 = vpop.permute.xlu0 %426
        %428 = vrot.lane.b32.xlu0 %v423, 16
        %v429 = vpop.permute.xlu0 %428
        %v430 = vsel %vm295, %v427, %v429
        %v431 = vsel %vm295, %v429, %v427
        %v432 = vsel %vm295, %v422, %v431
        %v433 = vsel %vm296, %v423, %v430
        %434 = vrot.lane.b32.xlu0 %v422, 112
        %v435 = vpop.permute.xlu0 %434
        %436 = vrot.lane.b32.xlu0 %v423, 112
        %v437 = vpop.permute.xlu0 %436
        %v438 = vsel %vm372, %v435, %v437
        %v439 = vsel %vm372, %v437, %v435
        %v440 = vsel %vm297, %v422, %v438
        %v441 = vsel %vm298, %v423, %v439
        %v442 = vmul.f32 %v420, 0.45186275
        %v443 = vadd.f32 %v432, %v440
        %v444 = vadd.f32 %v433, %v441
        %v445 = vmul.f32 %v443, 0.27406862
        %v446 = vmul.f32 %v444, 0.27406862
        %v449 = vrot.slane %v446, 7
        %v450 = vsel %vm417, %v445, %v449
        %v452 = vadd.f32 %v442, %v450
        %vm453 = vcmp.eq.s32.totalorder %v263, 0
        %v454 = vsel %vm453, 1, 0
        %v455 = vcvt.s32.f32 %v454
        %v457 = vperm.slane %v455, 0
        %v458 = vperm.slane %v455, 1
        %461 = vrot.lane.b32.xlu0 %v457, 1
        %v462 = vpop.permute.xlu0 %461
        %463 = vrot.lane.b32.xlu0 %v458, 1
        %v464 = vpop.permute.xlu0 %463
        %v465 = vsel %vm338, %v462, %v464
        %v466 = vsel %vm338, %v464, %v462
        %v467 = vsel %vm291, %v457, %v466
        %v468 = vsel %vm292, %v458, %v465
        %469 = vrot.lane.b32.xlu0 %v457, 127
        %v470 = vpop.permute.xlu0 %469
        %471 = vrot.lane.b32.xlu0 %v458, 127
        %v472 = vpop.permute.xlu0 %471
        %v473 = vsel %vm347, %v470, %v472
        %v474 = vsel %vm347, %v472, %v470
        %v475 = vsel %vm293, %v457, %v473
        %v476 = vsel %vm294, %v458, %v474
        %v477 = vmul.f32 %v455, 0.45186275
        %v478 = vadd.f32 %v467, %v475
        %v479 = vadd.f32 %v468, %v476
        %v480 = vmul.f32 %v478, 0.27406862
        %v481 = vmul.f32 %v479, 0.27406862
        %v484 = vrot.slane %v481, 7
        %v485 = vsel %vm417, %v480, %v484
        %v487 = vadd.f32 %v477, %v485
        %v489 = vperm.slane %v487, 0
        %v490 = vperm.slane %v487, 1
        %493 = vrot.lane.b32.xlu0 %v489, 16
        %v494 = vpop.permute.xlu0 %493
        %495 = vrot.lane.b32.xlu0 %v490, 16
        %v496 = vpop.permute.xlu0 %495
        %v497 = vsel %vm295, %v494, %v496
        %v498 = vsel %vm295, %v496, %v494
        %v499 = vsel %vm295, %v489, %v498
        %v500 = vsel %vm296, %v490, %v497
        %501 = vrot.lane.b32.xlu0 %v489, 112
        %v502 = vpop.permute.xlu0 %501
        %503 = vrot.lane.b32.xlu0 %v490, 112
        %v504 = vpop.permute.xlu0 %503
        %v505 = vsel %vm372, %v502, %v504
        %v506 = vsel %vm372, %v504, %v502
        %v507 = vsel %vm297, %v489, %v505
        %v508 = vsel %vm298, %v490, %v506
        %v509 = vmul.f32 %v487, 0.45186275
        %v510 = vadd.f32 %v499, %v507
        %v511 = vadd.f32 %v500, %v508
        %v512 = vmul.f32 %v510, 0.27406862
        %v513 = vmul.f32 %v511, 0.27406862
        %v516 = vrot.slane %v513, 7
        %v517 = vsel %vm417, %v512, %v516
        %v519 = vadd.f32 %v509, %v517
        %v520 = vrot.slane %v383, 7
        %v521 = vrot.slane %v384, 7
        %v523 = vperm.slane %v452, 0
        %v524 = vperm.slane %v452, 1
        %v527 = vsel %vm301, %v523, %v520
        %v528 = vsel %vm301, %v524, %v521
        %v529 = vrot.slane %v383, 1
        %v530 = vrot.slane %v384, 1
        %v532 = vperm.slane %v519, 0
        %v533 = vperm.slane %v519, 1
        %v536 = vsel %vm302, %v532, %v529
        %v537 = vsel %vm302, %v533, %v530
        %v538 = vmul.f32 %v383, 0.45186275
        %v539 = vmul.f32 %v384, 0.45186275
        %v540 = vadd.f32 %v527, %v536
        %v541 = vadd.f32 %v528, %v537
        %v542 = vmul.f32 %v540, 0.27406862
        %v543 = vmul.f32 %v541, 0.27406862
        %v544 = vadd.f32 %v538, %v542
        %v545 = vadd.f32 %v539, %v543
        %v546 = vmul.f32 %v332, 0.8154774
        %v547 = vmul.f32 %v333, 0.8154774
        %v548 = vadd.f32 %v544, %v546
        %v549 = vadd.f32 %v545, %v547
        %v550 = vmul.f32 %v548, 0.55081934
        %v551 = vmul.f32 %v549, 0.55081934
        %v552 = vmul.f32 %v550, %v320
        %v553 = vmul.f32 %v551, %v321
        %v554 = vsub.f32 %v306, %v318
        %v555 = vsub.f32 %v307, %v319
        %v556 = vmul.f32 %v554, 1.442695
        %v557 = vpow.pop %v556
        %v558 = vmul.f32 %v555, 1.442695
        %v559 = vpow.pop %v558
        %v560 = vadd.f32 %v326, %v557
        %v561 = vadd.f32 %v327, %v559
        %vm562 = vcmp.eq.s32.totalorder %v238, 1
        %vm563 = vcmp.eq.s32.totalorder %v239, 1
        %v564 = vsel %vm562, 1, 0
        %v565 = vsel %vm563, 1, 0
        %v566 = vcvt.s32.f32 %v564
        %v567 = vcvt.s32.f32 %v565
        %568 = vrot.lane.b32.xlu0 %v566, 1
        %v569 = vpop.permute.xlu0 %568
        %570 = vrot.lane.b32.xlu0 %v567, 1
        %v571 = vpop.permute.xlu0 %570
        %v572 = vsel %vm338, %v569, %v571
        %v573 = vsel %vm338, %v571, %v569
        %v574 = vsel %vm291, %v566, %v573
        %v575 = vsel %vm292, %v567, %v572
        %576 = vrot.lane.b32.xlu0 %v566, 127
        %v577 = vpop.permute.xlu0 %576
        %578 = vrot.lane.b32.xlu0 %v567, 127
        %v579 = vpop.permute.xlu0 %578
        %v580 = vsel %vm347, %v577, %v579
        %v581 = vsel %vm347, %v579, %v577
        %v582 = vsel %vm293, %v566, %v580
        %v583 = vsel %vm294, %v567, %v581
        %v584 = vmul.f32 %v566, 0.45186275
        %v585 = vmul.f32 %v567, 0.45186275
        %v586 = vadd.f32 %v574, %v582
        %v587 = vadd.f32 %v575, %v583
        %v588 = vmul.f32 %v586, 0.27406862
        %v589 = vmul.f32 %v587, 0.27406862
        %v590 = vadd.f32 %v584, %v588
        %v591 = vadd.f32 %v585, %v589
        %592 = vrot.lane.b32.xlu0 %v590, 16
        %v593 = vpop.permute.xlu0 %592
        %594 = vrot.lane.b32.xlu0 %v591, 16
        %v595 = vpop.permute.xlu0 %594
        %v596 = vsel %vm295, %v593, %v595
        %v597 = vsel %vm295, %v595, %v593
        %v598 = vsel %vm295, %v590, %v597
        %v599 = vsel %vm296, %v591, %v596
        %600 = vrot.lane.b32.xlu0 %v590, 112
        %v601 = vpop.permute.xlu0 %600
        %602 = vrot.lane.b32.xlu0 %v591, 112
        %v603 = vpop.permute.xlu0 %602
        %v604 = vsel %vm372, %v601, %v603
        %v605 = vsel %vm372, %v603, %v601
        %v606 = vsel %vm297, %v590, %v604
        %v607 = vsel %vm298, %v591, %v605
        %v608 = vmul.f32 %v590, 0.45186275
        %v609 = vmul.f32 %v591, 0.45186275
        %v610 = vadd.f32 %v598, %v606
        %v611 = vadd.f32 %v599, %v607
        %v612 = vmul.f32 %v610, 0.27406862
        %v613 = vmul.f32 %v611, 0.27406862
        %v614 = vadd.f32 %v608, %v612
        %v615 = vadd.f32 %v609, %v613
        %vm616 = vcmp.eq.s32.totalorder %v254, 1
        %v617 = vsel %vm616, 1, 0
        %v618 = vcvt.s32.f32 %v617
        %v620 = vperm.slane %v618, 0
        %v621 = vperm.slane %v618, 1
        %624 = vrot.lane.b32.xlu0 %v620, 1
        %v625 = vpop.permute.xlu0 %624
        %626 = vrot.lane.b32.xlu0 %v621, 1
        %v627 = vpop.permute.xlu0 %626
        %v628 = vsel %vm338, %v625, %v627
        %v629 = vsel %vm338, %v627, %v625
        %v630 = vsel %vm291, %v620, %v629
        %v631 = vsel %vm292, %v621, %v628
        %632 = vrot.lane.b32.xlu0 %v620, 127
        %v633 = vpop.permute.xlu0 %632
        %634 = vrot.lane.b32.xlu0 %v621, 127
        %v635 = vpop.permute.xlu0 %634
        %v636 = vsel %vm347, %v633, %v635
        %v637 = vsel %vm347, %v635, %v633
        %v638 = vsel %vm293, %v620, %v636
        %v639 = vsel %vm294, %v621, %v637
        %v640 = vmul.f32 %v618, 0.45186275
        %v641 = vadd.f32 %v630, %v638
        %v642 = vadd.f32 %v631, %v639
        %v643 = vmul.f32 %v641, 0.27406862
        %v644 = vmul.f32 %v642, 0.27406862
        %v647 = vrot.slane %v644, 7
        %v648 = vsel %vm417, %v643, %v647
        %v650 = vadd.f32 %v640, %v648
        %v652 = vperm.slane %v650, 0
        %v653 = vperm.slane %v650, 1
        %656 = vrot.lane.b32.xlu0 %v652, 16
        %v657 = vpop.permute.xlu0 %656
        %658 = vrot.lane.b32.xlu0 %v653, 16
        %v659 = vpop.permute.xlu0 %658
        %v660 = vsel %vm295, %v657, %v659
        %v661 = vsel %vm295, %v659, %v657
        %v662 = vsel %vm295, %v652, %v661
        %v663 = vsel %vm296, %v653, %v660
        %664 = vrot.lane.b32.xlu0 %v652, 112
        %v665 = vpop.permute.xlu0 %664
        %666 = vrot.lane.b32.xlu0 %v653, 112
        %v667 = vpop.permute.xlu0 %666
        %v668 = vsel %vm372, %v665, %v667
        %v669 = vsel %vm372, %v667, %v665
        %v670 = vsel %vm297, %v652, %v668
        %v671 = vsel %vm298, %v653, %v669
        %v672 = vmul.f32 %v650, 0.45186275
        %v673 = vadd.f32 %v662, %v670
        %v674 = vadd.f32 %v663, %v671
        %v675 = vmul.f32 %v673, 0.27406862
        %v676 = vmul.f32 %v674, 0.27406862
        %v679 = vrot.slane %v676, 7
        %v680 = vsel %vm417, %v675, %v679
        %v682 = vadd.f32 %v672, %v680
        %vm683 = vcmp.eq.s32.totalorder %v263, 1
        %v684 = vsel %vm683, 1, 0
        %v685 = vcvt.s32.f32 %v684
        %v687 = vperm.slane %v685, 0
        %v688 = vperm.slane %v685, 1
        %691 = vrot.lane.b32.xlu0 %v687, 1
        %v692 = vpop.permute.xlu0 %691
        %693 = vrot.lane.b32.xlu0 %v688, 1
        %v694 = vpop.permute.xlu0 %693
        %v695 = vsel %vm338, %v692, %v694
        %v696 = vsel %vm338, %v694, %v692
        %v697 = vsel %vm291, %v687, %v696
        %v698 = vsel %vm292, %v688, %v695
        %699 = vrot.lane.b32.xlu0 %v687, 127
        %v700 = vpop.permute.xlu0 %699
        %701 = vrot.lane.b32.xlu0 %v688, 127
        %v702 = vpop.permute.xlu0 %701
        %v703 = vsel %vm347, %v700, %v702
        %v704 = vsel %vm347, %v702, %v700
        %v705 = vsel %vm293, %v687, %v703
        %v706 = vsel %vm294, %v688, %v704
        %v707 = vmul.f32 %v685, 0.45186275
        %v708 = vadd.f32 %v697, %v705
        %v709 = vadd.f32 %v698, %v706
        %v710 = vmul.f32 %v708, 0.27406862
        %v711 = vmul.f32 %v709, 0.27406862
        %v714 = vrot.slane %v711, 7
        %v715 = vsel %vm417, %v710, %v714
        %v717 = vadd.f32 %v707, %v715
        %v719 = vperm.slane %v717, 0
        %v720 = vperm.slane %v717, 1
        %723 = vrot.lane.b32.xlu0 %v719, 16
        %v724 = vpop.permute.xlu0 %723
        %725 = vrot.lane.b32.xlu0 %v720, 16
        %v726 = vpop.permute.xlu0 %725
        %v727 = vsel %vm295, %v724, %v726
        %v728 = vsel %vm295, %v726, %v724
        %v729 = vsel %vm295, %v719, %v728
        %v730 = vsel %vm296, %v720, %v727
        %731 = vrot.lane.b32.xlu0 %v719, 112
        %v732 = vpop.permute.xlu0 %731
        %733 = vrot.lane.b32.xlu0 %v720, 112
        %v734 = vpop.permute.xlu0 %733
        %v735 = vsel %vm372, %v732, %v734
        %v736 = vsel %vm372, %v734, %v732
        %v737 = vsel %vm297, %v719, %v735
        %v738 = vsel %vm298, %v720, %v736
        %v739 = vmul.f32 %v717, 0.45186275
        %v740 = vadd.f32 %v729, %v737
        %v741 = vadd.f32 %v730, %v738
        %v742 = vmul.f32 %v740, 0.27406862
        %v743 = vmul.f32 %v741, 0.27406862
        %v746 = vrot.slane %v743, 7
        %v747 = vsel %vm417, %v742, %v746
        %v749 = vadd.f32 %v739, %v747
        %v750 = vrot.slane %v614, 7
        %v751 = vrot.slane %v615, 7
        %v753 = vperm.slane %v682, 0
        %v754 = vperm.slane %v682, 1
        %v757 = vsel %vm301, %v753, %v750
        %v758 = vsel %vm301, %v754, %v751
        %v759 = vrot.slane %v614, 1
        %v760 = vrot.slane %v615, 1
        %v762 = vperm.slane %v749, 0
        %v763 = vperm.slane %v749, 1
        %v766 = vsel %vm302, %v762, %v759
        %v767 = vsel %vm302, %v763, %v760
        %v768 = vmul.f32 %v614, 0.45186275
        %v769 = vmul.f32 %v615, 0.45186275
        %v770 = vadd.f32 %v757, %v766
        %v771 = vadd.f32 %v758, %v767
        %v772 = vmul.f32 %v770, 0.27406862
        %v773 = vmul.f32 %v771, 0.27406862
        %v774 = vadd.f32 %v768, %v772
        %v775 = vadd.f32 %v769, %v773
        %v776 = vmul.f32 %v566, 0.8154774
        %v777 = vmul.f32 %v567, 0.8154774
        %v778 = vadd.f32 %v774, %v776
        %v779 = vadd.f32 %v775, %v777
        %v780 = vmul.f32 %v778, 0.55081934
        %v781 = vmul.f32 %v779, 0.55081934
        %v782 = vmul.f32 %v780, %v554
        %v783 = vmul.f32 %v781, %v555
        %784 = vmatpush.msra.mxu0 1.0
        %785 = vmatpush.msra.mxu0 1.0
        %786 = vmatpush.msra.mxu0 1.0
        %787 = vmatpush.msra.mxu0 1.0
        %788 = vmatpush.msra.mxu0 1.0
        %789 = vmatpush.msra.mxu0 1.0
        %790 = vmatpush.msra.mxu0 1.0
        %791 = vmatpush.msra.mxu0 1.0
        %792 = vmatpush.msra.mxu0 1.0
        %793 = vmatpush.msra.mxu0 1.0
        %794 = vmatpush.msra.mxu0 1.0
        %795 = vmatpush.msra.mxu0 1.0
        %796 = vmatpush.msra.mxu0 1.0
        %797 = vmatpush.msra.mxu0 1.0
        %798 = vmatpush.msra.mxu0 1.0
        %799 = vmatpush.msra.mxu0 1.0
        %800 = vmatmul.f32.gmra.mxu0 %v782
        %v801 = vpop.f32.mrf.mxu0
        %v802 = vadd.f32 0.0, %v801
        %803 = vdwg.mxu0
        %804 = vmatpush.msra.mxu0 1.0
        %805 = vmatpush.msra.mxu0 1.0
        %806 = vmatpush.msra.mxu0 1.0
        %807 = vmatpush.msra.mxu0 1.0
        %808 = vmatpush.msra.mxu0 1.0
        %809 = vmatpush.msra.mxu0 1.0
        %810 = vmatpush.msra.mxu0 1.0
        %811 = vmatpush.msra.mxu0 1.0
        %812 = vmatpush.msra.mxu0 1.0
        %813 = vmatpush.msra.mxu0 1.0
        %814 = vmatpush.msra.mxu0 1.0
        %815 = vmatpush.msra.mxu0 1.0
        %816 = vmatpush.msra.mxu0 1.0
        %817 = vmatpush.msra.mxu0 1.0
        %818 = vmatpush.msra.mxu0 1.0
        %819 = vmatpush.msra.mxu0 1.0
        %820 = vmatmul.f32.gmra.mxu0 %v783
        %v821 = vpop.f32.mrf.mxu0
        %v822 = vadd.f32 %v802, %v821
        %823 = vdwg.mxu0
        %824 = vmatpush.msra.mxu0 1.0
        %825 = vmatpush.msra.mxu0 1.0
        %826 = vmatpush.msra.mxu0 1.0
        %827 = vmatpush.msra.mxu0 1.0
        %828 = vmatpush.msra.mxu0 1.0
        %829 = vmatpush.msra.mxu0 1.0
        %830 = vmatpush.msra.mxu0 1.0
        %831 = vmatpush.msra.mxu0 1.0
        %832 = vmatpush.msra.mxu0 1.0
        %833 = vmatpush.msra.mxu0 1.0
        %834 = vmatpush.msra.mxu0 1.0
        %835 = vmatpush.msra.mxu0 1.0
        %836 = vmatpush.msra.mxu0 1.0
        %837 = vmatpush.msra.mxu0 1.0
        %838 = vmatpush.msra.mxu0 1.0
        %839 = vmatpush.msra.mxu0 1.0
        %840 = vmatmul.f32.gmra.mxu0 %v552
        %v841 = vpop.f32.mrf.mxu0
        %v842 = vadd.f32 %v822, %v841
        %843 = vdwg.mxu0
        %844 = vmatpush.msra.mxu0 1.0
        %845 = vmatpush.msra.mxu0 1.0
        %846 = vmatpush.msra.mxu0 1.0
        %847 = vmatpush.msra.mxu0 1.0
        %848 = vmatpush.msra.mxu0 1.0
        %849 = vmatpush.msra.mxu0 1.0
        %850 = vmatpush.msra.mxu0 1.0
        %851 = vmatpush.msra.mxu0 1.0
        %852 = vmatpush.msra.mxu0 1.0
        %853 = vmatpush.msra.mxu0 1.0
        %854 = vmatpush.msra.mxu0 1.0
        %855 = vmatpush.msra.mxu0 1.0
        %856 = vmatpush.msra.mxu0 1.0
        %857 = vmatpush.msra.mxu0 1.0
        %858 = vmatpush.msra.mxu0 1.0
        %859 = vmatpush.msra.mxu0 1.0
        %860 = vmatmul.f32.gmra.mxu0 %v553
        %v861 = vpop.f32.mrf.mxu0
        %v862 = vadd.f32 %v842, %v861
        %863 = vdwg.mxu0
        %v864 = vsub.f32 %v311, %v318
        %v865 = vsub.f32 %v312, %v319
        %v866 = vmul.f32 %v864, 1.442695
        %v867 = vpow.pop %v866
        %v868 = vmul.f32 %v865, 1.442695
        %v869 = vpow.pop %v868
        %v870 = vadd.f32 %v560, %v867
        %v871 = vadd.f32 %v561, %v869
        %vm872 = vcmp.eq.s32.totalorder %v238, 2
        %vm873 = vcmp.eq.s32.totalorder %v239, 2
        %v874 = vsel %vm872, 1, 0
        %v875 = vsel %vm873, 1, 0
        %v876 = vcvt.s32.f32 %v874
        %v877 = vcvt.s32.f32 %v875
        %878 = vrot.lane.b32.xlu0 %v876, 1
        %v879 = vpop.permute.xlu0 %878
        %880 = vrot.lane.b32.xlu0 %v877, 1
        %v881 = vpop.permute.xlu0 %880
        %v882 = vsel %vm338, %v879, %v881
        %v883 = vsel %vm338, %v881, %v879
        %v884 = vsel %vm291, %v876, %v883
        %v885 = vsel %vm292, %v877, %v882
        %886 = vrot.lane.b32.xlu0 %v876, 127
        %v887 = vpop.permute.xlu0 %886
        %888 = vrot.lane.b32.xlu0 %v877, 127
        %v889 = vpop.permute.xlu0 %888
        %v890 = vsel %vm347, %v887, %v889
        %v891 = vsel %vm347, %v889, %v887
        %v892 = vsel %vm293, %v876, %v890
        %v893 = vsel %vm294, %v877, %v891
        %v894 = vmul.f32 %v876, 0.45186275
        %v895 = vmul.f32 %v877, 0.45186275
        %v896 = vadd.f32 %v884, %v892
        %v897 = vadd.f32 %v885, %v893
        %v898 = vmul.f32 %v896, 0.27406862
        %v899 = vmul.f32 %v897, 0.27406862
        %v900 = vadd.f32 %v894, %v898
        %v901 = vadd.f32 %v895, %v899
        %902 = vrot.lane.b32.xlu0 %v900, 16
        %v903 = vpop.permute.xlu0 %902
        %904 = vrot.lane.b32.xlu0 %v901, 16
        %v905 = vpop.permute.xlu0 %904
        %v906 = vsel %vm295, %v903, %v905
        %v907 = vsel %vm295, %v905, %v903
        %v908 = vsel %vm295, %v900, %v907
        %v909 = vsel %vm296, %v901, %v906
        %910 = vrot.lane.b32.xlu0 %v900, 112
        %v911 = vpop.permute.xlu0 %910
        %912 = vrot.lane.b32.xlu0 %v901, 112
        %v913 = vpop.permute.xlu0 %912
        %v914 = vsel %vm372, %v911, %v913
        %v915 = vsel %vm372, %v913, %v911
        %v916 = vsel %vm297, %v900, %v914
        %v917 = vsel %vm298, %v901, %v915
        %v918 = vmul.f32 %v900, 0.45186275
        %v919 = vmul.f32 %v901, 0.45186275
        %v920 = vadd.f32 %v908, %v916
        %v921 = vadd.f32 %v909, %v917
        %v922 = vmul.f32 %v920, 0.27406862
        %v923 = vmul.f32 %v921, 0.27406862
        %v924 = vadd.f32 %v918, %v922
        %v925 = vadd.f32 %v919, %v923
        %vm926 = vcmp.eq.s32.totalorder %v254, 2
        %v927 = vsel %vm926, 1, 0
        %v928 = vcvt.s32.f32 %v927
        %v930 = vperm.slane %v928, 0
        %v931 = vperm.slane %v928, 1
        %934 = vrot.lane.b32.xlu0 %v930, 1
        %v935 = vpop.permute.xlu0 %934
        %936 = vrot.lane.b32.xlu0 %v931, 1
        %v937 = vpop.permute.xlu0 %936
        %v938 = vsel %vm338, %v935, %v937
        %v939 = vsel %vm338, %v937, %v935
        %v940 = vsel %vm291, %v930, %v939
        %v941 = vsel %vm292, %v931, %v938
        %942 = vrot.lane.b32.xlu0 %v930, 127
        %v943 = vpop.permute.xlu0 %942
        %944 = vrot.lane.b32.xlu0 %v931, 127
        %v945 = vpop.permute.xlu0 %944
        %v946 = vsel %vm347, %v943, %v945
        %v947 = vsel %vm347, %v945, %v943
        %v948 = vsel %vm293, %v930, %v946
        %v949 = vsel %vm294, %v931, %v947
        %v950 = vmul.f32 %v928, 0.45186275
        %v951 = vadd.f32 %v940, %v948
        %v952 = vadd.f32 %v941, %v949
        %v953 = vmul.f32 %v951, 0.27406862
        %v954 = vmul.f32 %v952, 0.27406862
        %v957 = vrot.slane %v954, 7
        %v958 = vsel %vm417, %v953, %v957
        %v960 = vadd.f32 %v950, %v958
        %v962 = vperm.slane %v960, 0
        %v963 = vperm.slane %v960, 1
        %966 = vrot.lane.b32.xlu0 %v962, 16
        %v967 = vpop.permute.xlu0 %966
        %968 = vrot.lane.b32.xlu0 %v963, 16
        %v969 = vpop.permute.xlu0 %968
        %v970 = vsel %vm295, %v967, %v969
        %v971 = vsel %vm295, %v969, %v967
        %v972 = vsel %vm295, %v962, %v971
        %v973 = vsel %vm296, %v963, %v970
        %974 = vrot.lane.b32.xlu0 %v962, 112
        %v975 = vpop.permute.xlu0 %974
        %976 = vrot.lane.b32.xlu0 %v963, 112
        %v977 = vpop.permute.xlu0 %976
        %v978 = vsel %vm372, %v975, %v977
        %v979 = vsel %vm372, %v977, %v975
        %v980 = vsel %vm297, %v962, %v978
        %v981 = vsel %vm298, %v963, %v979
        %v982 = vmul.f32 %v960, 0.45186275
        %v983 = vadd.f32 %v972, %v980
        %v984 = vadd.f32 %v973, %v981
        %v985 = vmul.f32 %v983, 0.27406862
        %v986 = vmul.f32 %v984, 0.27406862
        %v989 = vrot.slane %v986, 7
        %v990 = vsel %vm417, %v985, %v989
        %v992 = vadd.f32 %v982, %v990
        %vm993 = vcmp.eq.s32.totalorder %v263, 2
        %v994 = vsel %vm993, 1, 0
        %v995 = vcvt.s32.f32 %v994
        %v997 = vperm.slane %v995, 0
        %v998 = vperm.slane %v995, 1
        %1001 = vrot.lane.b32.xlu0 %v997, 1
        %v1002 = vpop.permute.xlu0 %1001
        %1003 = vrot.lane.b32.xlu0 %v998, 1
        %v1004 = vpop.permute.xlu0 %1003
        %v1005 = vsel %vm338, %v1002, %v1004
        %v1006 = vsel %vm338, %v1004, %v1002
        %v1007 = vsel %vm291, %v997, %v1006
        %v1008 = vsel %vm292, %v998, %v1005
        %1009 = vrot.lane.b32.xlu0 %v997, 127
        %v1010 = vpop.permute.xlu0 %1009
        %1011 = vrot.lane.b32.xlu0 %v998, 127
        %v1012 = vpop.permute.xlu0 %1011
        %v1013 = vsel %vm347, %v1010, %v1012
        %v1014 = vsel %vm347, %v1012, %v1010
        %v1015 = vsel %vm293, %v997, %v1013
        %v1016 = vsel %vm294, %v998, %v1014
        %v1017 = vmul.f32 %v995, 0.45186275
        %v1018 = vadd.f32 %v1007, %v1015
        %v1019 = vadd.f32 %v1008, %v1016
        %v1020 = vmul.f32 %v1018, 0.27406862
        %v1021 = vmul.f32 %v1019, 0.27406862
        %v1024 = vrot.slane %v1021, 7
        %v1025 = vsel %vm417, %v1020, %v1024
        %v1027 = vadd.f32 %v1017, %v1025
        %v1029 = vperm.slane %v1027, 0
        %v1030 = vperm.slane %v1027, 1
        %1033 = vrot.lane.b32.xlu0 %v1029, 16
        %v1034 = vpop.permute.xlu0 %1033
        %1035 = vrot.lane.b32.xlu0 %v1030, 16
        %v1036 = vpop.permute.xlu0 %1035
        %v1037 = vsel %vm295, %v1034, %v1036
        %v1038 = vsel %vm295, %v1036, %v1034
        %v1039 = vsel %vm295, %v1029, %v1038
        %v1040 = vsel %vm296, %v1030, %v1037
        %1041 = vrot.lane.b32.xlu0 %v1029, 112
        %v1042 = vpop.permute.xlu0 %1041
        %1043 = vrot.lane.b32.xlu0 %v1030, 112
        %v1044 = vpop.permute.xlu0 %1043
        %v1045 = vsel %vm372, %v1042, %v1044
        %v1046 = vsel %vm372, %v1044, %v1042
        %v1047 = vsel %vm297, %v1029, %v1045
        %v1048 = vsel %vm298, %v1030, %v1046
        %v1049 = vmul.f32 %v1027, 0.45186275
        %v1050 = vadd.f32 %v1039, %v1047
        %v1051 = vadd.f32 %v1040, %v1048
        %v1052 = vmul.f32 %v1050, 0.27406862
        %v1053 = vmul.f32 %v1051, 0.27406862
        %v1056 = vrot.slane %v1053, 7
        %v1057 = vsel %vm417, %v1052, %v1056
        %v1059 = vadd.f32 %v1049, %v1057
        %v1060 = vrot.slane %v924, 7
        %v1061 = vrot.slane %v925, 7
        %v1063 = vperm.slane %v992, 0
        %v1064 = vperm.slane %v992, 1
        %v1067 = vsel %vm301, %v1063, %v1060
        %v1068 = vsel %vm301, %v1064, %v1061
        %v1069 = vrot.slane %v924, 1
        %v1070 = vrot.slane %v925, 1
        %v1072 = vperm.slane %v1059, 0
        %v1073 = vperm.slane %v1059, 1
        %v1076 = vsel %vm302, %v1072, %v1069
        %v1077 = vsel %vm302, %v1073, %v1070
        %v1078 = vmul.f32 %v924, 0.45186275
        %v1079 = vmul.f32 %v925, 0.45186275
        %v1080 = vadd.f32 %v1067, %v1076
        %v1081 = vadd.f32 %v1068, %v1077
        %v1082 = vmul.f32 %v1080, 0.27406862
        %v1083 = vmul.f32 %v1081, 0.27406862
        %v1084 = vadd.f32 %v1078, %v1082
        %v1085 = vadd.f32 %v1079, %v1083
        %v1086 = vmul.f32 %v876, 0.8154774
        %v1087 = vmul.f32 %v877, 0.8154774
        %v1088 = vadd.f32 %v1084, %v1086
        %v1089 = vadd.f32 %v1085, %v1087
        %v1090 = vmul.f32 %v1088, 0.55081934
        %v1091 = vmul.f32 %v1089, 0.55081934
        %v1092 = vmul.f32 %v1090, %v864
        %v1093 = vmul.f32 %v1091, %v865
        %1094 = vmatpush.msra.mxu0 1.0
        %1095 = vmatpush.msra.mxu0 1.0
        %1096 = vmatpush.msra.mxu0 1.0
        %1097 = vmatpush.msra.mxu0 1.0
        %1098 = vmatpush.msra.mxu0 1.0
        %1099 = vmatpush.msra.mxu0 1.0
        %1100 = vmatpush.msra.mxu0 1.0
        %1101 = vmatpush.msra.mxu0 1.0
        %1102 = vmatpush.msra.mxu0 1.0
        %1103 = vmatpush.msra.mxu0 1.0
        %1104 = vmatpush.msra.mxu0 1.0
        %1105 = vmatpush.msra.mxu0 1.0
        %1106 = vmatpush.msra.mxu0 1.0
        %1107 = vmatpush.msra.mxu0 1.0
        %1108 = vmatpush.msra.mxu0 1.0
        %1109 = vmatpush.msra.mxu0 1.0
        %1110 = vmatmul.f32.gmra.mxu0 %v1092
        %v1111 = vpop.f32.mrf.mxu0
        %v1112 = vadd.f32 0.0, %v1111
        %1113 = vdwg.mxu0
        %1114 = vmatpush.msra.mxu0 1.0
        %1115 = vmatpush.msra.mxu0 1.0
        %1116 = vmatpush.msra.mxu0 1.0
        %1117 = vmatpush.msra.mxu0 1.0
        %1118 = vmatpush.msra.mxu0 1.0
        %1119 = vmatpush.msra.mxu0 1.0
        %1120 = vmatpush.msra.mxu0 1.0
        %1121 = vmatpush.msra.mxu0 1.0
        %1122 = vmatpush.msra.mxu0 1.0
        %1123 = vmatpush.msra.mxu0 1.0
        %1124 = vmatpush.msra.mxu0 1.0
        %1125 = vmatpush.msra.mxu0 1.0
        %1126 = vmatpush.msra.mxu0 1.0
        %1127 = vmatpush.msra.mxu0 1.0
        %1128 = vmatpush.msra.mxu0 1.0
        %1129 = vmatpush.msra.mxu0 1.0
        %1130 = vmatmul.f32.gmra.mxu0 %v1093
        %v1131 = vpop.f32.mrf.mxu0
        %v1132 = vadd.f32 %v1112, %v1131
        %1133 = vdwg.mxu0
        %v1134 = vadd.f32 %v862, %v1132
        %v1135 = vsub.f32 %v316, %v318
        %v1136 = vsub.f32 %v317, %v319
        %v1137 = vmul.f32 %v1135, 1.442695
        %v1138 = vpow.pop %v1137
        %v1139 = vmul.f32 %v1136, 1.442695
        %v1140 = vpow.pop %v1139
        %v1141 = vadd.f32 %v870, %v1138
        %v1142 = vadd.f32 %v871, %v1140
        %vm1143 = vcmp.eq.s32.totalorder %v238, 3
        %vm1144 = vcmp.eq.s32.totalorder %v239, 3
        %v1145 = vsel %vm1143, 1, 0
        %v1146 = vsel %vm1144, 1, 0
        %v1147 = vcvt.s32.f32 %v1145
        %v1148 = vcvt.s32.f32 %v1146
        %1149 = vrot.lane.b32.xlu0 %v1147, 1
        %v1150 = vpop.permute.xlu0 %1149
        %1151 = vrot.lane.b32.xlu0 %v1148, 1
        %v1152 = vpop.permute.xlu0 %1151
        %v1153 = vsel %vm338, %v1150, %v1152
        %v1154 = vsel %vm338, %v1152, %v1150
        %v1155 = vsel %vm291, %v1147, %v1154
        %v1156 = vsel %vm292, %v1148, %v1153
        %1157 = vrot.lane.b32.xlu0 %v1147, 127
        %v1158 = vpop.permute.xlu0 %1157
        %1159 = vrot.lane.b32.xlu0 %v1148, 127
        %v1160 = vpop.permute.xlu0 %1159
        %v1161 = vsel %vm347, %v1158, %v1160
        %v1162 = vsel %vm347, %v1160, %v1158
        %v1163 = vsel %vm293, %v1147, %v1161
        %v1164 = vsel %vm294, %v1148, %v1162
        %v1165 = vmul.f32 %v1147, 0.45186275
        %v1166 = vmul.f32 %v1148, 0.45186275
        %v1167 = vadd.f32 %v1155, %v1163
        %v1168 = vadd.f32 %v1156, %v1164
        %v1169 = vmul.f32 %v1167, 0.27406862
        %v1170 = vmul.f32 %v1168, 0.27406862
        %v1171 = vadd.f32 %v1165, %v1169
        %v1172 = vadd.f32 %v1166, %v1170
        %1173 = vrot.lane.b32.xlu0 %v1171, 16
        %v1174 = vpop.permute.xlu0 %1173
        %1175 = vrot.lane.b32.xlu0 %v1172, 16
        %v1176 = vpop.permute.xlu0 %1175
        %v1177 = vsel %vm295, %v1174, %v1176
        %v1178 = vsel %vm295, %v1176, %v1174
        %v1179 = vsel %vm295, %v1171, %v1178
        %v1180 = vsel %vm296, %v1172, %v1177
        %1181 = vrot.lane.b32.xlu0 %v1171, 112
        %v1182 = vpop.permute.xlu0 %1181
        %1183 = vrot.lane.b32.xlu0 %v1172, 112
        %v1184 = vpop.permute.xlu0 %1183
        %v1185 = vsel %vm372, %v1182, %v1184
        %v1186 = vsel %vm372, %v1184, %v1182
        %v1187 = vsel %vm297, %v1171, %v1185
        %v1188 = vsel %vm298, %v1172, %v1186
        %v1189 = vmul.f32 %v1171, 0.45186275
        %v1190 = vmul.f32 %v1172, 0.45186275
        %v1191 = vadd.f32 %v1179, %v1187
        %v1192 = vadd.f32 %v1180, %v1188
        %v1193 = vmul.f32 %v1191, 0.27406862
        %v1194 = vmul.f32 %v1192, 0.27406862
        %v1195 = vadd.f32 %v1189, %v1193
        %v1196 = vadd.f32 %v1190, %v1194
        %vm1197 = vcmp.eq.s32.totalorder %v254, 3
        %v1198 = vsel %vm1197, 1, 0
        %v1199 = vcvt.s32.f32 %v1198
        %v1201 = vperm.slane %v1199, 0
        %v1202 = vperm.slane %v1199, 1
        %1205 = vrot.lane.b32.xlu0 %v1201, 1
        %v1206 = vpop.permute.xlu0 %1205
        %1207 = vrot.lane.b32.xlu0 %v1202, 1
        %v1208 = vpop.permute.xlu0 %1207
        %v1209 = vsel %vm338, %v1206, %v1208
        %v1210 = vsel %vm338, %v1208, %v1206
        %v1211 = vsel %vm291, %v1201, %v1210
        %v1212 = vsel %vm292, %v1202, %v1209
        %1213 = vrot.lane.b32.xlu0 %v1201, 127
        %v1214 = vpop.permute.xlu0 %1213
        %1215 = vrot.lane.b32.xlu0 %v1202, 127
        %v1216 = vpop.permute.xlu0 %1215
        %v1217 = vsel %vm347, %v1214, %v1216
        %v1218 = vsel %vm347, %v1216, %v1214
        %v1219 = vsel %vm293, %v1201, %v1217
        %v1220 = vsel %vm294, %v1202, %v1218
        %v1221 = vmul.f32 %v1199, 0.45186275
        %v1222 = vadd.f32 %v1211, %v1219
        %v1223 = vadd.f32 %v1212, %v1220
        %v1224 = vmul.f32 %v1222, 0.27406862
        %v1225 = vmul.f32 %v1223, 0.27406862
        %v1228 = vrot.slane %v1225, 7
        %v1229 = vsel %vm417, %v1224, %v1228
        %v1231 = vadd.f32 %v1221, %v1229
        %v1233 = vperm.slane %v1231, 0
        %v1234 = vperm.slane %v1231, 1
        %1237 = vrot.lane.b32.xlu0 %v1233, 16
        %v1238 = vpop.permute.xlu0 %1237
        %1239 = vrot.lane.b32.xlu0 %v1234, 16
        %v1240 = vpop.permute.xlu0 %1239
        %v1241 = vsel %vm295, %v1238, %v1240
        %v1242 = vsel %vm295, %v1240, %v1238
        %v1243 = vsel %vm295, %v1233, %v1242
        %v1244 = vsel %vm296, %v1234, %v1241
        %1245 = vrot.lane.b32.xlu0 %v1233, 112
        %v1246 = vpop.permute.xlu0 %1245
        %1247 = vrot.lane.b32.xlu0 %v1234, 112
        %v1248 = vpop.permute.xlu0 %1247
        %v1249 = vsel %vm372, %v1246, %v1248
        %v1250 = vsel %vm372, %v1248, %v1246
        %v1251 = vsel %vm297, %v1233, %v1249
        %v1252 = vsel %vm298, %v1234, %v1250
        %v1253 = vmul.f32 %v1231, 0.45186275
        %v1254 = vadd.f32 %v1243, %v1251
        %v1255 = vadd.f32 %v1244, %v1252
        %v1256 = vmul.f32 %v1254, 0.27406862
        %v1257 = vmul.f32 %v1255, 0.27406862
        %v1260 = vrot.slane %v1257, 7
        %v1261 = vsel %vm417, %v1256, %v1260
        %v1263 = vadd.f32 %v1253, %v1261
        %vm1264 = vcmp.eq.s32.totalorder %v263, 3
        %v1265 = vsel %vm1264, 1, 0
        %v1266 = vcvt.s32.f32 %v1265
        %v1268 = vperm.slane %v1266, 0
        %v1269 = vperm.slane %v1266, 1
        %1272 = vrot.lane.b32.xlu0 %v1268, 1
        %v1273 = vpop.permute.xlu0 %1272
        %1274 = vrot.lane.b32.xlu0 %v1269, 1
        %v1275 = vpop.permute.xlu0 %1274
        %v1276 = vsel %vm338, %v1273, %v1275
        %v1277 = vsel %vm338, %v1275, %v1273
        %v1278 = vsel %vm291, %v1268, %v1277
        %v1279 = vsel %vm292, %v1269, %v1276
        %1280 = vrot.lane.b32.xlu0 %v1268, 127
        %v1281 = vpop.permute.xlu0 %1280
        %1282 = vrot.lane.b32.xlu0 %v1269, 127
        %v1283 = vpop.permute.xlu0 %1282
        %v1284 = vsel %vm347, %v1281, %v1283
        %v1285 = vsel %vm347, %v1283, %v1281
        %v1286 = vsel %vm293, %v1268, %v1284
        %v1287 = vsel %vm294, %v1269, %v1285
        %v1288 = vmul.f32 %v1266, 0.45186275
        %v1289 = vadd.f32 %v1278, %v1286
        %v1290 = vadd.f32 %v1279, %v1287
        %v1291 = vmul.f32 %v1289, 0.27406862
        %v1292 = vmul.f32 %v1290, 0.27406862
        %v1295 = vrot.slane %v1292, 7
        %v1296 = vsel %vm417, %v1291, %v1295
        %v1298 = vadd.f32 %v1288, %v1296
        %v1300 = vperm.slane %v1298, 0
        %v1301 = vperm.slane %v1298, 1
        %1304 = vrot.lane.b32.xlu0 %v1300, 16
        %v1305 = vpop.permute.xlu0 %1304
        %1306 = vrot.lane.b32.xlu0 %v1301, 16
        %v1307 = vpop.permute.xlu0 %1306
        %v1308 = vsel %vm295, %v1305, %v1307
        %v1309 = vsel %vm295, %v1307, %v1305
        %v1310 = vsel %vm295, %v1300, %v1309
        %v1311 = vsel %vm296, %v1301, %v1308
        %1312 = vrot.lane.b32.xlu0 %v1300, 112
        %v1313 = vpop.permute.xlu0 %1312
        %1314 = vrot.lane.b32.xlu0 %v1301, 112
        %v1315 = vpop.permute.xlu0 %1314
        %v1316 = vsel %vm372, %v1313, %v1315
        %v1317 = vsel %vm372, %v1315, %v1313
        %v1318 = vsel %vm297, %v1300, %v1316
        %v1319 = vsel %vm298, %v1301, %v1317
        %v1320 = vmul.f32 %v1298, 0.45186275
        %v1321 = vadd.f32 %v1310, %v1318
        %v1322 = vadd.f32 %v1311, %v1319
        %v1323 = vmul.f32 %v1321, 0.27406862
        %v1324 = vmul.f32 %v1322, 0.27406862
        %v1327 = vrot.slane %v1324, 7
        %v1328 = vsel %vm417, %v1323, %v1327
        %v1330 = vadd.f32 %v1320, %v1328
        %v1331 = vrot.slane %v1195, 7
        %v1332 = vrot.slane %v1196, 7
        %v1334 = vperm.slane %v1263, 0
        %v1335 = vperm.slane %v1263, 1
        %v1338 = vsel %vm301, %v1334, %v1331
        %v1339 = vsel %vm301, %v1335, %v1332
        %v1340 = vrot.slane %v1195, 1
        %v1341 = vrot.slane %v1196, 1
        %v1343 = vperm.slane %v1330, 0
        %v1344 = vperm.slane %v1330, 1
        %v1347 = vsel %vm302, %v1343, %v1340
        %v1348 = vsel %vm302, %v1344, %v1341
        %v1349 = vmul.f32 %v1195, 0.45186275
        %v1350 = vmul.f32 %v1196, 0.45186275
        %v1351 = vadd.f32 %v1338, %v1347
        %v1352 = vadd.f32 %v1339, %v1348
        %v1353 = vmul.f32 %v1351, 0.27406862
        %v1354 = vmul.f32 %v1352, 0.27406862
        %v1355 = vadd.f32 %v1349, %v1353
        %v1356 = vadd.f32 %v1350, %v1354
        %v1357 = vmul.f32 %v1147, 0.8154774
        %v1358 = vmul.f32 %v1148, 0.8154774
        %v1359 = vadd.f32 %v1355, %v1357
        %v1360 = vadd.f32 %v1356, %v1358
        %v1361 = vmul.f32 %v1359, 0.55081934
        %v1362 = vmul.f32 %v1360, 0.55081934
        %v1363 = vmul.f32 %v1361, %v1135
        %v1364 = vmul.f32 %v1362, %v1136
        %1365 = vmatpush.msra.mxu0 1.0
        %1366 = vmatpush.msra.mxu0 1.0
        %1367 = vmatpush.msra.mxu0 1.0
        %1368 = vmatpush.msra.mxu0 1.0
        %1369 = vmatpush.msra.mxu0 1.0
        %1370 = vmatpush.msra.mxu0 1.0
        %1371 = vmatpush.msra.mxu0 1.0
        %1372 = vmatpush.msra.mxu0 1.0
        %1373 = vmatpush.msra.mxu0 1.0
        %1374 = vmatpush.msra.mxu0 1.0
        %1375 = vmatpush.msra.mxu0 1.0
        %1376 = vmatpush.msra.mxu0 1.0
        %1377 = vmatpush.msra.mxu0 1.0
        %1378 = vmatpush.msra.mxu0 1.0
        %1379 = vmatpush.msra.mxu0 1.0
        %1380 = vmatpush.msra.mxu0 1.0
        %1381 = vmatmul.f32.gmra.mxu0 %v1363
        %v1382 = vpop.f32.mrf.mxu0
        %v1383 = vadd.f32 0.0, %v1382
        %1384 = vdwg.mxu0
        %1385 = vmatpush.msra.mxu0 1.0
        %1386 = vmatpush.msra.mxu0 1.0
        %1387 = vmatpush.msra.mxu0 1.0
        %1388 = vmatpush.msra.mxu0 1.0
        %1389 = vmatpush.msra.mxu0 1.0
        %1390 = vmatpush.msra.mxu0 1.0
        %1391 = vmatpush.msra.mxu0 1.0
        %1392 = vmatpush.msra.mxu0 1.0
        %1393 = vmatpush.msra.mxu0 1.0
        %1394 = vmatpush.msra.mxu0 1.0
        %1395 = vmatpush.msra.mxu0 1.0
        %1396 = vmatpush.msra.mxu0 1.0
        %1397 = vmatpush.msra.mxu0 1.0
        %1398 = vmatpush.msra.mxu0 1.0
        %1399 = vmatpush.msra.mxu0 1.0
        %1400 = vmatpush.msra.mxu0 1.0
        %1401 = vmatmul.f32.gmra.mxu0 %v1364
        %v1402 = vpop.f32.mrf.mxu0
        %v1403 = vadd.f32 %v1383, %v1402
        %1404 = vdwg.mxu0
        %v1405 = vadd.f32 %v1134, %v1403
        %v1406 = vlog2.pop %v1141
        %v1407 = vmul.f32 %v1406, 0.6931472
        %v1408 = vlog2.pop %v1142
        %v1409 = vmul.f32 %v1408, 0.6931472
        %1410 = vmatpush.msra.mxu0 1.0
        %1411 = vmatpush.msra.mxu0 1.0
        %1412 = vmatpush.msra.mxu0 1.0
        %1413 = vmatpush.msra.mxu0 1.0
        %1414 = vmatpush.msra.mxu0 1.0
        %1415 = vmatpush.msra.mxu0 1.0
        %1416 = vmatpush.msra.mxu0 1.0
        %1417 = vmatpush.msra.mxu0 1.0
        %1418 = vmatpush.msra.mxu0 1.0
        %1419 = vmatpush.msra.mxu0 1.0
        %1420 = vmatpush.msra.mxu0 1.0
        %1421 = vmatpush.msra.mxu0 1.0
        %1422 = vmatpush.msra.mxu0 1.0
        %1423 = vmatpush.msra.mxu0 1.0
        %1424 = vmatpush.msra.mxu0 1.0
        %1425 = vmatpush.msra.mxu0 1.0
        %1426 = vmatmul.f32.gmra.mxu0 %v1407
        %v1427 = vpop.f32.mrf.mxu0
        %v1428 = vadd.f32 0.0, %v1427
        %1429 = vdwg.mxu0
        %1430 = vmatpush.msra.mxu0 1.0
        %1431 = vmatpush.msra.mxu0 1.0
        %1432 = vmatpush.msra.mxu0 1.0
        %1433 = vmatpush.msra.mxu0 1.0
        %1434 = vmatpush.msra.mxu0 1.0
        %1435 = vmatpush.msra.mxu0 1.0
        %1436 = vmatpush.msra.mxu0 1.0
        %1437 = vmatpush.msra.mxu0 1.0
        %1438 = vmatpush.msra.mxu0 1.0
        %1439 = vmatpush.msra.mxu0 1.0
        %1440 = vmatpush.msra.mxu0 1.0
        %1441 = vmatpush.msra.mxu0 1.0
        %1442 = vmatpush.msra.mxu0 1.0
        %1443 = vmatpush.msra.mxu0 1.0
        %1444 = vmatpush.msra.mxu0 1.0
        %1445 = vmatpush.msra.mxu0 1.0
        %1446 = vmatmul.f32.gmra.mxu0 %v1409
        %v1447 = vpop.f32.mrf.mxu0
        %v1448 = vadd.f32 %v1428, %v1447
        %1449 = vdwg.mxu0
        %v1450 = vsub.f32 %v1448, %v1405
        %vm1451 = vcmask 7168
        %1452 = vst.msk [vmem:[%s231] sm:$0xff] %vm1451, %v1450
        %p1453 = scmp.lt.s32.totalorder %s23, 1
        %s1454 = scalar_select %p1453, %s23, 1
        %p1455 = scmp.lt.s32.totalorder %s24, 1
        %s1456 = scalar_select %p1455, %s24, 1
        %s1457 = smul.addr %s1454, 2
        %s1458 = sadd.s32 %s1456, %s1457
        %s1459 = smul.addr %s1458, 8
        %s1460 = scalar_lea.vmem %s2, %s1459
        // Predicated region
        $region37: #{tpu_custom_call.1} parent=27 // pred_check
          %p1461 = pneg %p105
        $region38: #{tpu_custom_call.1} parent=27 // pred_check_branch
          %1463 = sbr.rel (%p1461) target = $region40
        $region39: #{tpu_custom_call.1} parent=27 // pred_region
          _
        $region40: #{tpu_custom_call.1} parent=27 // pred_fallthru
          _
      $region28: #{tpu_custom_call.1} parent=5 // pred_fallthru
        _
      %p1464 = scmp.le.s32.totalorder 2, %s14
      // Predicated region
      $region41: #{tpu_custom_call.1} parent=5 // pred_check
        %p1465 = pneg %p1464
      $region42: #{tpu_custom_call.1} parent=5 // pred_check_branch
        %1467 = sbr.rel (%p1465) target = $region44
      $region43: #{tpu_custom_call.1} parent=5 // pred_region
        %s1468 = ssub.s32 %s14, 2
        // Predicated region
        $region45: #{tpu_custom_call.1} parent=43 // pred_check
          %p1469 = pneg %p111
        $region46: #{tpu_custom_call.1} parent=43 // pred_check_branch
          %1471 = sbr.rel (%p1469) target = $region48
        $region47: #{tpu_custom_call.1} parent=43 // pred_region
          %p1472 = scmp.lt.s32.totalorder %s25, 1
          %s1473 = scalar_select %p1472, %s25, 1
          %p1474 = scmp.lt.s32.totalorder %s26, 1
          %s1475 = scalar_select %p1474, %s26, 1
          %s1476 = smul.addr %s1473, 2
          %s1477 = sadd.s32 %s1475, %s1476
          %s1478 = smul.addr %s1477, 8
          %s1479 = scalar_lea.vmem %s2, %s1478
        $region48: #{tpu_custom_call.1} parent=43 // pred_fallthru
          _
      $region44: #{tpu_custom_call.1} parent=5 // pred_fallthru
        _
    $region6: #{tpu_custom_call.1} parent=1 // loop_footer
      %s18 = sadd.s32 1, %s14
    $region7: #{tpu_custom_call.1} parent=1 // loop_footer_branch
      %13 = sbr.rel target = $region3
    $region8: #{tpu_custom_call.1} parent=1 // loop_exit
      _
    %1480 = vsyncpa [#allocation3], 1
    %s1481 = scalar_lea.sflag [#allocation3], 1
    %1482 = vsyncpa %s1481, 1
    %1483 = vsyncpa [#allocation5], 1
    %s1484 = scalar_lea.sflag [#allocation5], 1
    %1485 = vsyncpa %s1484, 1

</llo_original>
